<compile_context>
chip_gen: v5e
topology: v5e:2x2
jax: 0.10.0
libtpu: 0.0.40
codegen_flags: <defaults>
</compile_context>

<pallas_src>
import math

import jax
import jax.numpy as jnp
from jax.experimental import pallas as pl
from jax.experimental.pallas import tpu as pltpu

INPUT_SIZE = 4
HIDDEN_SIZE = 32
NUM_LAYERS = 2
OUTPUT_SIZE = 3
DROPOUT_P = 0.25      # nn.Dropout -> identity at inference
OUT_PAD = 128         # lane-dense padded output width (>= OUTPUT_SIZE)
B_PAD = 8             # batch padded to one full sublane group


# ------------------------- fused Pallas kernel -------------------------

def mma_rnn_kernel(x_ref, len_ref,
                   wih0_ref, whh0_ref, b0_ref,
                   w1_ref, b1_ref,
                   wl_ref, bl_ref,
                   o_ref):
    """Fused 2-layer LSTM (packed-seq masking) + Linear.

    Row layout: sequences are time-major-flattened, row r = t * B + b (B = padded batch).

    x_ref:    (T*B, D)  bf16   input sequence
    len_ref:  (B, 1)    int32  per-sequence lengths (0 for padded batch rows)
    wih0_ref: (D, 4H)   bf16   layer-0 input->gate weights, gate order i|f|g|o along lanes
    whh0_ref: (H, 4H)   bf16   layer-0 hidden->gate weights
    b0_ref:   (1, 4H)   f32    layer-0 bias (b_ih + b_hh folded)
    w1_ref:   (2H, 4H)  bf16   layer-1 [input->gate ; hidden->gate] stacked on K
    b1_ref:   (1, 4H)   f32    layer-1 bias
    wl_ref:   (H, OUT_PAD) bf16  linear weight, zero-padded past OUTPUT_SIZE
    bl_ref:   (1, OUT_PAD) f32   linear bias,   zero-padded past OUTPUT_SIZE
    o_ref:    (T*B, OUT_PAD) f32 lane-dense output slab
    """
    TB, _ = x_ref.shape
    B = len_ref.shape[0]
    T = TB // B
    H = whh0_ref.shape[0]

    lengths = len_ref[...]                          # (B, 1) int32, loaded once
    # Per-step packed-sequence masks; independent of the recurrence carry, so they sit
    # entirely off the critical path.
    valid = [t < lengths for t in range(T)]         # list of (B, 1) bool

    # Hoisted layer-0 input projection: one (T*B, D) x (D, 4H) bf16 matmul, f32 accumulate,
    # done once before the recurrence.  Stays in vregs (8 f32 vregs), no scratch.
    b0 = b0_ref[...]
    xw0 = jnp.dot(x_ref[...], wih0_ref[...],
                  preferred_element_type=jnp.float32) + b0      # (T*B, 4H) f32

    # Weights loaded once; bf16 so they occupy few vregs across the unrolled loop.
    whh0 = whh0_ref[...]                            # (H, 4H)  bf16
    w1 = w1_ref[...]                                # (2H, 4H) bf16
    b1 = b1_ref[...]                                # (1, 4H)  f32

    def lstm_update(gates, c, h, v):
        # gates: (B, 4H) f32, PyTorch gate order i|f|g|o along lanes.
        sg = jax.nn.sigmoid(gates)                  # one EUP pass over the full vreg
        i_g = sg[:, 0:H]
        f_g = sg[:, H:2 * H]
        o_g = sg[:, 3 * H:4 * H]
        g_g = jnp.tanh(gates[:, 2 * H:3 * H])
        c_new = f_g * c + i_g * g_g
        h_new = o_g * jnp.tanh(c_new)
        # packed-sequence semantics: state only advances on valid timesteps
        c = jnp.where(v, c_new, c)
        h = jnp.where(v, h_new, h)
        y = jnp.where(v, h_new, 0.0)                # pad_packed_sequence zero-fill
        return c, h, y

    zero = jnp.zeros((B, H), jnp.float32)
    h0, c0 = zero, zero
    h1, c1 = zero, zero
    y0 = [None] * T                                 # layer-0 outputs (each (B, H) f32)
    y1 = [None] * T                                 # layer-1 outputs (each (B, H) f32)

    def layer1_step(t):
        # Layer-1 input+recurrent projection as ONE K=2H matmul on [y0_t | h1].
        nonlocal h1, c1
        inp = jnp.concatenate([y0[t], h1], axis=1).astype(jnp.bfloat16)   # (B, 2H)
        gates1 = jnp.dot(inp, w1, preferred_element_type=jnp.float32) + b1
        c1, h1, y1[t] = lstm_update(gates1, c1, h1, valid[t])

    # Fully unrolled, interleaved recurrence: layer-0 step t and layer-1 step t-1 are
    # independent dependency chains, so their MXU push->pop / EUP latencies overlap.
    for t in range(T):
        gates0 = xw0[t * B:(t + 1) * B] + jnp.dot(
            h0.astype(jnp.bfloat16), whh0, preferred_element_type=jnp.float32)
        c0, h0, y0[t] = lstm_update(gates0, c0, h0, valid[t])
        if t > 0:
            layer1_step(t - 1)
    layer1_step(T - 1)

    # TODO(synk): nn.Dropout(p=0.25) is identity at inference; training-mode dropout not implemented.
    # Final Linear over every (padded) position; padded rows are zero -> output = bias (as in torch).
    y_all = jnp.concatenate(y1, axis=0).astype(jnp.bfloat16)    # (T*B, H)
    o_ref[...] = jnp.dot(y_all, wl_ref[...],
                         preferred_element_type=jnp.float32) + bl_ref[...]


# ------------------------- wrapper -------------------------

def mma_rnn_forward(X, lengths, params):
    """X: (B, T, input_size) padded batch-first; lengths sorted descending.

    As in the PyTorch example usage, assumes max(lengths) == T
    (pad_packed_sequence would otherwise truncate the time axis to max(lengths)).
    """
    B, T, D = X.shape
    BP = B_PAD
    wl = params["wl"]
    OP = wl.shape[1]

    # time-major flatten, batch padded to a full sublane group: row r = t * BP + b
    x = jnp.transpose(X, (1, 0, 2)).astype(jnp.float32)          # (T, B, D)
    x = jnp.pad(x, ((0, 0), (0, BP - B), (0, 0)))                # (T, BP, D)
    x2d = x.reshape(T * BP, D).astype(jnp.bfloat16)
    len_col = jnp.pad(lengths.astype(jnp.int32), (0, BP - B)).reshape(BP, 1)

    out2d = pl.pallas_call(
        mma_rnn_kernel,
        grid=(1,),
        out_shape=jax.ShapeDtypeStruct((T * BP, OP), jnp.float32),
        in_specs=[
            pl.BlockSpec((T * BP, D), lambda i: (0, 0)),
            pl.BlockSpec((BP, 1), lambda i: (0, 0)),
            pl.BlockSpec(params["wih0"].shape, lambda i: (0, 0)),
            pl.BlockSpec(params["whh0"].shape, lambda i: (0, 0)),
            pl.BlockSpec(params["b0"].shape, lambda i: (0, 0)),
            pl.BlockSpec(params["w1"].shape, lambda i: (0, 0)),
            pl.BlockSpec(params["b1"].shape, lambda i: (0, 0)),
            pl.BlockSpec(params["wl"].shape, lambda i: (0, 0)),
            pl.BlockSpec(params["bl"].shape, lambda i: (0, 0)),
        ],
        out_specs=pl.BlockSpec((T * BP, OP), lambda i: (0, 0)),
        compiler_params=pltpu.CompilerParams(
            dimension_semantics=("arbitrary",)),
    )(x2d, len_col, params["wih0"], params["whh0"], params["b0"],
      params["w1"], params["b1"], params["wl"], params["bl"])

    out = out2d.reshape(T, BP, OP)[:, :B, :OUTPUT_SIZE]
    return jnp.transpose(out, (1, 0, 2))             # (B, T, output_size)


# ------------------------- params -------------------------

def init_raw_params(key):
    """PyTorch-shaped parameters, uniform(-1/sqrt(H), 1/sqrt(H)) init."""
    bound = 1.0 / math.sqrt(HIDDEN_SIZE)
    raw = {"lstm": []}
    in_sz = INPUT_SIZE
    for _ in range(NUM_LAYERS):
        key, k1, k2, k3, k4 = jax.random.split(key, 5)
        w_ih = jax.random.uniform(k1, (4 * HIDDEN_SIZE, in_sz), jnp.float32, -bound, bound)
        w_hh = jax.random.uniform(k2, (4 * HIDDEN_SIZE, HIDDEN_SIZE), jnp.float32, -bound, bound)
        b_ih = jax.random.uniform(k3, (4 * HIDDEN_SIZE,), jnp.float32, -bound, bound)
        b_hh = jax.random.uniform(k4, (4 * HIDDEN_SIZE,), jnp.float32, -bound, bound)
        raw["lstm"].append((w_ih, w_hh, b_ih, b_hh))
        in_sz = HIDDEN_SIZE
    key, k5, k6 = jax.random.split(key, 3)
    w_l1 = jax.random.uniform(k5, (OUTPUT_SIZE, HIDDEN_SIZE), jnp.float32, -bound, bound)
    b_l1 = jax.random.uniform(k6, (OUTPUT_SIZE,), jnp.float32, -bound, bound)
    raw["l1"] = (w_l1, b_l1)
    return raw


def pack_params(raw):
    """Repack torch-shaped weights into the kernel layout:
    fused gates on the lane axis (i|f|g|o), folded biases, layer-1 input+recurrent weights
    stacked on K, bf16 MXU operands, lane-dense padded Linear."""
    H = HIDDEN_SIZE
    (w_ih0, w_hh0, b_ih0, b_hh0), (w_ih1, w_hh1, b_ih1, b_hh1) = raw["lstm"]
    w_l1, b_l1 = raw["l1"]
    wl = jnp.zeros((H, OUT_PAD), jnp.float32).at[:, :OUTPUT_SIZE].set(w_l1.T)
    bl = jnp.zeros((1, OUT_PAD), jnp.float32).at[:, :OUTPUT_SIZE].set(b_l1[None, :])
    return {
        "wih0": w_ih0.T.astype(jnp.bfloat16),                               # (D, 4H)
        "whh0": w_hh0.T.astype(jnp.bfloat16),                               # (H, 4H)
        "b0":   (b_ih0 + b_hh0)[None, :].astype(jnp.float32),               # (1, 4H)
        "w1":   jnp.concatenate([w_ih1.T, w_hh1.T], 0).astype(jnp.bfloat16),  # (2H, 4H)
        "b1":   (b_ih1 + b_hh1)[None, :].astype(jnp.float32),               # (1, 4H)
        "wl":   wl.astype(jnp.bfloat16),                                    # (H, OUT_PAD)
        "bl":   bl,                                                         # (1, OUT_PAD)
    }


# ------------------------- pure-JAX reference (correctness check) -------------------------

def mma_rnn_reference(X, lengths, raw):
    B, T, _ = X.shape
    H = HIDDEN_SIZE
    x = jnp.transpose(X, (1, 0, 2)).astype(jnp.float32)                       # (T, B, in)
    mask = (jnp.arange(T)[:, None] < lengths[None, :]).astype(jnp.float32)[..., None]
    for (w_ih, w_hh, b_ih, b_hh) in raw["lstm"]:
        h = jnp.zeros((B, H), jnp.float32)
        c = jnp.zeros((B, H), jnp.float32)
        ys = []
        for t in range(T):
            gates = x[t] @ w_ih.T + h @ w_hh.T + b_ih + b_hh
            i = jax.nn.sigmoid(gates[:, 0 * H:1 * H])
            f = jax.nn.sigmoid(gates[:, 1 * H:2 * H])
            g = jnp.tanh(gates[:, 2 * H:3 * H])
            o = jax.nn.sigmoid(gates[:, 3 * H:4 * H])
            c_new = f * c + i * g
            h_new = o * jnp.tanh(c_new)
            m = mask[t]
            h = m * h_new + (1.0 - m) * h
            c = m * c_new + (1.0 - m) * c
            ys.append(m * h_new)
        x = jnp.stack(ys)                                                     # (T, B, H)
    w_l1, b_l1 = raw["l1"]
    out = x @ w_l1.T + b_l1                                                   # (T, B, O)
    return jnp.transpose(out, (1, 0, 2))


if __name__ == "__main__":
    key = jax.random.PRNGKey(0)
    key, kx = jax.random.split(key)
    B, T = 2, 8
    X = jax.random.normal(kx, (B, T, INPUT_SIZE), jnp.float32)
    lengths = jnp.array([8, 5], dtype=jnp.int32)     # sorted descending (enforce_sorted=True)
    # zero out padding positions like a padded batch
    t_idx = jnp.arange(T)[None, :, None]
    X = X * (t_idx < lengths[:, None, None]).astype(jnp.float32)

    raw = init_raw_params(key)
    params = pack_params(raw)

    out = jax.jit(mma_rnn_forward)(X, lengths, params)
    jax.block_until_ready(out)
    assert out.shape == (B, T, OUTPUT_SIZE)

    ref = mma_rnn_reference(X, lengths, raw)
    assert jnp.allclose(out, ref, rtol=2e-2, atol=2e-2), float(jnp.max(jnp.abs(out - ref)))

    print("KERNEL_OK")
</pallas_src>

<mosaic_0001>
module attributes {stable_mosaic.version = 11 : i64} {
  func.func @mma_rnn_kernel(%arg0: i32, %arg1: memref<64x4xbf16, #tpu.memory_space<vmem>>, %arg2: memref<8x1xi32, #tpu.memory_space<vmem>>, %arg3: memref<4x128xbf16, #tpu.memory_space<vmem>>, %arg4: memref<32x128xbf16, #tpu.memory_space<vmem>>, %arg5: memref<1x128xf32, #tpu.memory_space<vmem>>, %arg6: memref<64x128xbf16, #tpu.memory_space<vmem>>, %arg7: memref<1x128xf32, #tpu.memory_space<vmem>>, %arg8: memref<32x128xbf16, #tpu.memory_space<vmem>>, %arg9: memref<1x128xf32, #tpu.memory_space<vmem>>, %arg10: memref<64x128xf32, #tpu.memory_space<vmem>>) attributes {dimension_semantics = [#tpu.dimension_semantics<arbitrary>], iteration_bounds = array<i64: 1>, scalar_prefetch = 0 : i64, scratch_operands = 0 : i64, tpu.core_type = #tpu.core_type<tc>, window_params = [{pipeline_mode = #tpu.pipeline_mode<synchronous>, transform_indices = @transform_0, window_bounds = array<i64: 64, 4>}, {pipeline_mode = #tpu.pipeline_mode<synchronous>, transform_indices = @transform_1, window_bounds = array<i64: 8, 1>}, {pipeline_mode = #tpu.pipeline_mode<synchronous>, transform_indices = @transform_2, window_bounds = array<i64: 4, 128>}, {pipeline_mode = #tpu.pipeline_mode<synchronous>, transform_indices = @transform_3, window_bounds = array<i64: 32, 128>}, {pipeline_mode = #tpu.pipeline_mode<synchronous>, transform_indices = @transform_4, window_bounds = array<i64: 1, 128>}, {pipeline_mode = #tpu.pipeline_mode<synchronous>, transform_indices = @transform_5, window_bounds = array<i64: 64, 128>}, {pipeline_mode = #tpu.pipeline_mode<synchronous>, transform_indices = @transform_6, window_bounds = array<i64: 1, 128>}, {pipeline_mode = #tpu.pipeline_mode<synchronous>, transform_indices = @transform_7, window_bounds = array<i64: 32, 128>}, {pipeline_mode = #tpu.pipeline_mode<synchronous>, transform_indices = @transform_8, window_bounds = array<i64: 1, 128>}, {pipeline_mode = #tpu.pipeline_mode<synchronous>, transform_indices = @transform_9, window_bounds = array<i64: 64, 128>}]} {
    %c0 = arith.constant 0 : index
    %c0_0 = arith.constant 0 : index
    %0 = vector.load %arg2[%c0, %c0_0] : memref<8x1xi32, #tpu.memory_space<vmem>>, vector<8x1xi32>
    %c0_i32 = arith.constant 0 : i32
    %1 = vector.broadcast %c0_i32 : i32 to vector<8x1xi32>
    %2 = arith.cmpi sgt, %0, %1 : vector<8x1xi32>
    %c1_i32 = arith.constant 1 : i32
    %3 = vector.broadcast %c1_i32 : i32 to vector<8x1xi32>
    %4 = arith.cmpi sgt, %0, %3 : vector<8x1xi32>
    %c2_i32 = arith.constant 2 : i32
    %5 = vector.broadcast %c2_i32 : i32 to vector<8x1xi32>
    %6 = arith.cmpi sgt, %0, %5 : vector<8x1xi32>
    %c3_i32 = arith.constant 3 : i32
    %7 = vector.broadcast %c3_i32 : i32 to vector<8x1xi32>
    %8 = arith.cmpi sgt, %0, %7 : vector<8x1xi32>
    %c4_i32 = arith.constant 4 : i32
    %9 = vector.broadcast %c4_i32 : i32 to vector<8x1xi32>
    %10 = arith.cmpi sgt, %0, %9 : vector<8x1xi32>
    %c5_i32 = arith.constant 5 : i32
    %11 = vector.broadcast %c5_i32 : i32 to vector<8x1xi32>
    %12 = arith.cmpi sgt, %0, %11 : vector<8x1xi32>
    %c6_i32 = arith.constant 6 : i32
    %13 = vector.broadcast %c6_i32 : i32 to vector<8x1xi32>
    %14 = arith.cmpi sgt, %0, %13 : vector<8x1xi32>
    %c7_i32 = arith.constant 7 : i32
    %15 = vector.broadcast %c7_i32 : i32 to vector<8x1xi32>
    %16 = arith.cmpi sgt, %0, %15 : vector<8x1xi32>
    %c0_1 = arith.constant 0 : index
    %c0_2 = arith.constant 0 : index
    %17 = vector.load %arg5[%c0_1, %c0_2] : memref<1x128xf32, #tpu.memory_space<vmem>>, vector<1x128xf32>
    %c0_3 = arith.constant 0 : index
    %c0_4 = arith.constant 0 : index
    %18 = vector.load %arg1[%c0_3, %c0_4] : memref<64x4xbf16, #tpu.memory_space<vmem>>, vector<64x4xbf16>
    %c0_5 = arith.constant 0 : index
    %c0_6 = arith.constant 0 : index
    %19 = vector.load %arg3[%c0_5, %c0_6] : memref<4x128xbf16, #tpu.memory_space<vmem>>, vector<4x128xbf16>
    %cst = arith.constant dense<0.000000e+00> : vector<64x128xf32>
    %20 = tpu.matmul %18, %19, %cst {dimension_numbers = #tpu.dot_dimension_numbers<[1], [0], [0], [1], [0, 0, 1, 1], [], []>} : vector<64x4xbf16>, vector<4x128xbf16>, vector<64x128xf32> -> vector<64x128xf32>
    %21 = vector.broadcast %17 : vector<1x128xf32> to vector<64x128xf32>
    %22 = arith.addf %20, %21 : vector<64x128xf32>
    %c0_7 = arith.constant 0 : index
    %c0_8 = arith.constant 0 : index
    %23 = vector.load %arg4[%c0_7, %c0_8] : memref<32x128xbf16, #tpu.memory_space<vmem>>, vector<32x128xbf16>
    %c0_9 = arith.constant 0 : index
    %c0_10 = arith.constant 0 : index
    %24 = vector.load %arg6[%c0_9, %c0_10] : memref<64x128xbf16, #tpu.memory_space<vmem>>, vector<64x128xbf16>
    %c0_11 = arith.constant 0 : index
    %c0_12 = arith.constant 0 : index
    %25 = vector.load %arg7[%c0_11, %c0_12] : memref<1x128xf32, #tpu.memory_space<vmem>>, vector<1x128xf32>
    %cst_13 = arith.constant 0.000000e+00 : f32
    %26 = vector.broadcast %cst_13 : f32 to vector<8x32xf32>
    %27 = vector.extract_strided_slice %22 {offsets = [0, 0], sizes = [8, 128], strides = [1, 1]} : vector<64x128xf32> to vector<8x128xf32>
    %28 = arith.truncf %26 : vector<8x32xf32> to vector<8x32xbf16>
    %cst_14 = arith.constant dense<0.000000e+00> : vector<8x128xf32>
    %29 = tpu.matmul %28, %23, %cst_14 {dimension_numbers = #tpu.dot_dimension_numbers<[1], [0], [0], [1], [0, 0, 1, 1], [], []>} : vector<8x32xbf16>, vector<32x128xbf16>, vector<8x128xf32> -> vector<8x128xf32>
    %30 = arith.addf %27, %29 : vector<8x128xf32>
    %31 = arith.negf %30 : vector<8x128xf32>
    %32 = math.exp %31 : vector<8x128xf32>
    %cst_15 = arith.constant 1.000000e+00 : f32
    %33 = vector.broadcast %cst_15 : f32 to vector<8x128xf32>
    %34 = arith.addf %33, %32 : vector<8x128xf32>
    %35 = arith.divf %33, %34 : vector<8x128xf32>
    %36 = vector.extract_strided_slice %35 {offsets = [0, 0], sizes = [8, 32], strides = [1, 1]} : vector<8x128xf32> to vector<8x32xf32>
    %37 = vector.extract_strided_slice %35 {offsets = [0, 32], sizes = [8, 32], strides = [1, 1]} : vector<8x128xf32> to vector<8x32xf32>
    %38 = vector.extract_strided_slice %35 {offsets = [0, 96], sizes = [8, 32], strides = [1, 1]} : vector<8x128xf32> to vector<8x32xf32>
    %39 = vector.extract_strided_slice %30 {offsets = [0, 64], sizes = [8, 32], strides = [1, 1]} : vector<8x128xf32> to vector<8x32xf32>
    %40 = math.tanh %39 : vector<8x32xf32>
    %41 = arith.mulf %37, %26 : vector<8x32xf32>
    %42 = arith.mulf %36, %40 : vector<8x32xf32>
    %43 = arith.addf %41, %42 : vector<8x32xf32>
    %44 = math.tanh %43 : vector<8x32xf32>
    %45 = arith.mulf %38, %44 : vector<8x32xf32>
    %46 = vector.shape_cast %2 : vector<8x1xi1> to vector<8x1xi1>
    %47 = vector.broadcast %46 : vector<8x1xi1> to vector<8x32xi1>
    %48 = arith.select %47, %43, %26 : vector<8x32xi1>, vector<8x32xf32>
    %49 = vector.shape_cast %2 : vector<8x1xi1> to vector<8x1xi1>
    %50 = vector.broadcast %49 : vector<8x1xi1> to vector<8x32xi1>
    %51 = arith.select %50, %45, %26 : vector<8x32xi1>, vector<8x32xf32>
    %cst_16 = arith.constant 0.000000e+00 : f32
    %52 = vector.shape_cast %2 : vector<8x1xi1> to vector<8x1xi1>
    %53 = vector.broadcast %52 : vector<8x1xi1> to vector<8x32xi1>
    %54 = vector.broadcast %cst_16 : f32 to vector<8x32xf32>
    %55 = arith.select %53, %45, %54 : vector<8x32xi1>, vector<8x32xf32>
    %56 = vector.extract_strided_slice %22 {offsets = [8, 0], sizes = [8, 128], strides = [1, 1]} : vector<64x128xf32> to vector<8x128xf32>
    %57 = arith.truncf %51 : vector<8x32xf32> to vector<8x32xbf16>
    %cst_17 = arith.constant dense<0.000000e+00> : vector<8x128xf32>
    %58 = tpu.matmul %57, %23, %cst_17 {dimension_numbers = #tpu.dot_dimension_numbers<[1], [0], [0], [1], [0, 0, 1, 1], [], []>} : vector<8x32xbf16>, vector<32x128xbf16>, vector<8x128xf32> -> vector<8x128xf32>
    %59 = arith.addf %56, %58 : vector<8x128xf32>
    %60 = arith.negf %59 : vector<8x128xf32>
    %61 = math.exp %60 : vector<8x128xf32>
    %cst_18 = arith.constant 1.000000e+00 : f32
    %62 = vector.broadcast %cst_18 : f32 to vector<8x128xf32>
    %63 = arith.addf %62, %61 : vector<8x128xf32>
    %64 = arith.divf %62, %63 : vector<8x128xf32>
    %65 = vector.extract_strided_slice %64 {offsets = [0, 0], sizes = [8, 32], strides = [1, 1]} : vector<8x128xf32> to vector<8x32xf32>
    %66 = vector.extract_strided_slice %64 {offsets = [0, 32], sizes = [8, 32], strides = [1, 1]} : vector<8x128xf32> to vector<8x32xf32>
    %67 = vector.extract_strided_slice %64 {offsets = [0, 96], sizes = [8, 32], strides = [1, 1]} : vector<8x128xf32> to vector<8x32xf32>
    %68 = vector.extract_strided_slice %59 {offsets = [0, 64], sizes = [8, 32], strides = [1, 1]} : vector<8x128xf32> to vector<8x32xf32>
    %69 = math.tanh %68 : vector<8x32xf32>
    %70 = arith.mulf %66, %48 : vector<8x32xf32>
    %71 = arith.mulf %65, %69 : vector<8x32xf32>
    %72 = arith.addf %70, %71 : vector<8x32xf32>
    %73 = math.tanh %72 : vector<8x32xf32>
    %74 = arith.mulf %67, %73 : vector<8x32xf32>
    %75 = vector.shape_cast %4 : vector<8x1xi1> to vector<8x1xi1>
    %76 = vector.broadcast %75 : vector<8x1xi1> to vector<8x32xi1>
    %77 = arith.select %76, %72, %48 : vector<8x32xi1>, vector<8x32xf32>
    %78 = vector.shape_cast %4 : vector<8x1xi1> to vector<8x1xi1>
    %79 = vector.broadcast %78 : vector<8x1xi1> to vector<8x32xi1>
    %80 = arith.select %79, %74, %51 : vector<8x32xi1>, vector<8x32xf32>
    %cst_19 = arith.constant 0.000000e+00 : f32
    %81 = vector.shape_cast %4 : vector<8x1xi1> to vector<8x1xi1>
    %82 = vector.broadcast %81 : vector<8x1xi1> to vector<8x32xi1>
    %83 = vector.broadcast %cst_19 : f32 to vector<8x32xf32>
    %84 = arith.select %82, %74, %83 : vector<8x32xi1>, vector<8x32xf32>
    %85 = tpu.concatenate %55, %26 in 1 : vector<8x32xf32>, vector<8x32xf32> -> vector<8x64xf32>
    %86 = arith.truncf %85 : vector<8x64xf32> to vector<8x64xbf16>
    %cst_20 = arith.constant dense<0.000000e+00> : vector<8x128xf32>
    %87 = tpu.matmul %86, %24, %cst_20 {dimension_numbers = #tpu.dot_dimension_numbers<[1], [0], [0], [1], [0, 0, 1, 1], [], []>} : vector<8x64xbf16>, vector<64x128xbf16>, vector<8x128xf32> -> vector<8x128xf32>
    %88 = vector.broadcast %25 : vector<1x128xf32> to vector<8x128xf32>
    %89 = arith.addf %87, %88 : vector<8x128xf32>
    %90 = arith.negf %89 : vector<8x128xf32>
    %91 = math.exp %90 : vector<8x128xf32>
    %cst_21 = arith.constant 1.000000e+00 : f32
    %92 = vector.broadcast %cst_21 : f32 to vector<8x128xf32>
    %93 = arith.addf %92, %91 : vector<8x128xf32>
    %94 = arith.divf %92, %93 : vector<8x128xf32>
    %95 = vector.extract_strided_slice %94 {offsets = [0, 0], sizes = [8, 32], strides = [1, 1]} : vector<8x128xf32> to vector<8x32xf32>
    %96 = vector.extract_strided_slice %94 {offsets = [0, 32], sizes = [8, 32], strides = [1, 1]} : vector<8x128xf32> to vector<8x32xf32>
    %97 = vector.extract_strided_slice %94 {offsets = [0, 96], sizes = [8, 32], strides = [1, 1]} : vector<8x128xf32> to vector<8x32xf32>
    %98 = vector.extract_strided_slice %89 {offsets = [0, 64], sizes = [8, 32], strides = [1, 1]} : vector<8x128xf32> to vector<8x32xf32>
    %99 = math.tanh %98 : vector<8x32xf32>
    %100 = arith.mulf %96, %26 : vector<8x32xf32>
    %101 = arith.mulf %95, %99 : vector<8x32xf32>
    %102 = arith.addf %100, %101 : vector<8x32xf32>
    %103 = math.tanh %102 : vector<8x32xf32>
    %104 = arith.mulf %97, %103 : vector<8x32xf32>
    %105 = vector.shape_cast %2 : vector<8x1xi1> to vector<8x1xi1>
    %106 = vector.broadcast %105 : vector<8x1xi1> to vector<8x32xi1>
    %107 = arith.select %106, %102, %26 : vector<8x32xi1>, vector<8x32xf32>
    %108 = vector.shape_cast %2 : vector<8x1xi1> to vector<8x1xi1>
    %109 = vector.broadcast %108 : vector<8x1xi1> to vector<8x32xi1>
    %110 = arith.select %109, %104, %26 : vector<8x32xi1>, vector<8x32xf32>
    %cst_22 = arith.constant 0.000000e+00 : f32
    %111 = vector.shape_cast %2 : vector<8x1xi1> to vector<8x1xi1>
    %112 = vector.broadcast %111 : vector<8x1xi1> to vector<8x32xi1>
    %113 = vector.broadcast %cst_22 : f32 to vector<8x32xf32>
    %114 = arith.select %112, %104, %113 : vector<8x32xi1>, vector<8x32xf32>
    %115 = vector.extract_strided_slice %22 {offsets = [16, 0], sizes = [8, 128], strides = [1, 1]} : vector<64x128xf32> to vector<8x128xf32>
    %116 = arith.truncf %80 : vector<8x32xf32> to vector<8x32xbf16>
    %cst_23 = arith.constant dense<0.000000e+00> : vector<8x128xf32>
    %117 = tpu.matmul %116, %23, %cst_23 {dimension_numbers = #tpu.dot_dimension_numbers<[1], [0], [0], [1], [0, 0, 1, 1], [], []>} : vector<8x32xbf16>, vector<32x128xbf16>, vector<8x128xf32> -> vector<8x128xf32>
    %118 = arith.addf %115, %117 : vector<8x128xf32>
    %119 = arith.negf %118 : vector<8x128xf32>
    %120 = math.exp %119 : vector<8x128xf32>
    %cst_24 = arith.constant 1.000000e+00 : f32
    %121 = vector.broadcast %cst_24 : f32 to vector<8x128xf32>
    %122 = arith.addf %121, %120 : vector<8x128xf32>
    %123 = arith.divf %121, %122 : vector<8x128xf32>
    %124 = vector.extract_strided_slice %123 {offsets = [0, 0], sizes = [8, 32], strides = [1, 1]} : vector<8x128xf32> to vector<8x32xf32>
    %125 = vector.extract_strided_slice %123 {offsets = [0, 32], sizes = [8, 32], strides = [1, 1]} : vector<8x128xf32> to vector<8x32xf32>
    %126 = vector.extract_strided_slice %123 {offsets = [0, 96], sizes = [8, 32], strides = [1, 1]} : vector<8x128xf32> to vector<8x32xf32>
    %127 = vector.extract_strided_slice %118 {offsets = [0, 64], sizes = [8, 32], strides = [1, 1]} : vector<8x128xf32> to vector<8x32xf32>
    %128 = math.tanh %127 : vector<8x32xf32>
    %129 = arith.mulf %125, %77 : vector<8x32xf32>
    %130 = arith.mulf %124, %128 : vector<8x32xf32>
    %131 = arith.addf %129, %130 : vector<8x32xf32>
    %132 = math.tanh %131 : vector<8x32xf32>
    %133 = arith.mulf %126, %132 : vector<8x32xf32>
    %134 = vector.shape_cast %6 : vector<8x1xi1> to vector<8x1xi1>
    %135 = vector.broadcast %134 : vector<8x1xi1> to vector<8x32xi1>
    %136 = arith.select %135, %131, %77 : vector<8x32xi1>, vector<8x32xf32>
    %137 = vector.shape_cast %6 : vector<8x1xi1> to vector<8x1xi1>
    %138 = vector.broadcast %137 : vector<8x1xi1> to vector<8x32xi1>
    %139 = arith.select %138, %133, %80 : vector<8x32xi1>, vector<8x32xf32>
    %cst_25 = arith.constant 0.000000e+00 : f32
    %140 = vector.shape_cast %6 : vector<8x1xi1> to vector<8x1xi1>
    %141 = vector.broadcast %140 : vector<8x1xi1> to vector<8x32xi1>
    %142 = vector.broadcast %cst_25 : f32 to vector<8x32xf32>
    %143 = arith.select %141, %133, %142 : vector<8x32xi1>, vector<8x32xf32>
    %144 = tpu.concatenate %84, %110 in 1 : vector<8x32xf32>, vector<8x32xf32> -> vector<8x64xf32>
    %145 = arith.truncf %144 : vector<8x64xf32> to vector<8x64xbf16>
    %cst_26 = arith.constant dense<0.000000e+00> : vector<8x128xf32>
    %146 = tpu.matmul %145, %24, %cst_26 {dimension_numbers = #tpu.dot_dimension_numbers<[1], [0], [0], [1], [0, 0, 1, 1], [], []>} : vector<8x64xbf16>, vector<64x128xbf16>, vector<8x128xf32> -> vector<8x128xf32>
    %147 = vector.broadcast %25 : vector<1x128xf32> to vector<8x128xf32>
    %148 = arith.addf %146, %147 : vector<8x128xf32>
    %149 = arith.negf %148 : vector<8x128xf32>
    %150 = math.exp %149 : vector<8x128xf32>
    %cst_27 = arith.constant 1.000000e+00 : f32
    %151 = vector.broadcast %cst_27 : f32 to vector<8x128xf32>
    %152 = arith.addf %151, %150 : vector<8x128xf32>
    %153 = arith.divf %151, %152 : vector<8x128xf32>
    %154 = vector.extract_strided_slice %153 {offsets = [0, 0], sizes = [8, 32], strides = [1, 1]} : vector<8x128xf32> to vector<8x32xf32>
    %155 = vector.extract_strided_slice %153 {offsets = [0, 32], sizes = [8, 32], strides = [1, 1]} : vector<8x128xf32> to vector<8x32xf32>
    %156 = vector.extract_strided_slice %153 {offsets = [0, 96], sizes = [8, 32], strides = [1, 1]} : vector<8x128xf32> to vector<8x32xf32>
    %157 = vector.extract_strided_slice %148 {offsets = [0, 64], sizes = [8, 32], strides = [1, 1]} : vector<8x128xf32> to vector<8x32xf32>
    %158 = math.tanh %157 : vector<8x32xf32>
    %159 = arith.mulf %155, %107 : vector<8x32xf32>
    %160 = arith.mulf %154, %158 : vector<8x32xf32>
    %161 = arith.addf %159, %160 : vector<8x32xf32>
    %162 = math.tanh %161 : vector<8x32xf32>
    %163 = arith.mulf %156, %162 : vector<8x32xf32>
    %164 = vector.shape_cast %4 : vector<8x1xi1> to vector<8x1xi1>
    %165 = vector.broadcast %164 : vector<8x1xi1> to vector<8x32xi1>
    %166 = arith.select %165, %161, %107 : vector<8x32xi1>, vector<8x32xf32>
    %167 = vector.shape_cast %4 : vector<8x1xi1> to vector<8x1xi1>
    %168 = vector.broadcast %167 : vector<8x1xi1> to vector<8x32xi1>
    %169 = arith.select %168, %163, %110 : vector<8x32xi1>, vector<8x32xf32>
    %cst_28 = arith.constant 0.000000e+00 : f32
    %170 = vector.shape_cast %4 : vector<8x1xi1> to vector<8x1xi1>
    %171 = vector.broadcast %170 : vector<8x1xi1> to vector<8x32xi1>
    %172 = vector.broadcast %cst_28 : f32 to vector<8x32xf32>
    %173 = arith.select %171, %163, %172 : vector<8x32xi1>, vector<8x32xf32>
    %174 = vector.extract_strided_slice %22 {offsets = [24, 0], sizes = [8, 128], strides = [1, 1]} : vector<64x128xf32> to vector<8x128xf32>
    %175 = arith.truncf %139 : vector<8x32xf32> to vector<8x32xbf16>
    %cst_29 = arith.constant dense<0.000000e+00> : vector<8x128xf32>
    %176 = tpu.matmul %175, %23, %cst_29 {dimension_numbers = #tpu.dot_dimension_numbers<[1], [0], [0], [1], [0, 0, 1, 1], [], []>} : vector<8x32xbf16>, vector<32x128xbf16>, vector<8x128xf32> -> vector<8x128xf32>
    %177 = arith.addf %174, %176 : vector<8x128xf32>
    %178 = arith.negf %177 : vector<8x128xf32>
    %179 = math.exp %178 : vector<8x128xf32>
    %cst_30 = arith.constant 1.000000e+00 : f32
    %180 = vector.broadcast %cst_30 : f32 to vector<8x128xf32>
    %181 = arith.addf %180, %179 : vector<8x128xf32>
    %182 = arith.divf %180, %181 : vector<8x128xf32>
    %183 = vector.extract_strided_slice %182 {offsets = [0, 0], sizes = [8, 32], strides = [1, 1]} : vector<8x128xf32> to vector<8x32xf32>
    %184 = vector.extract_strided_slice %182 {offsets = [0, 32], sizes = [8, 32], strides = [1, 1]} : vector<8x128xf32> to vector<8x32xf32>
    %185 = vector.extract_strided_slice %182 {offsets = [0, 96], sizes = [8, 32], strides = [1, 1]} : vector<8x128xf32> to vector<8x32xf32>
    %186 = vector.extract_strided_slice %177 {offsets = [0, 64], sizes = [8, 32], strides = [1, 1]} : vector<8x128xf32> to vector<8x32xf32>
    %187 = math.tanh %186 : vector<8x32xf32>
    %188 = arith.mulf %184, %136 : vector<8x32xf32>
    %189 = arith.mulf %183, %187 : vector<8x32xf32>
    %190 = arith.addf %188, %189 : vector<8x32xf32>
    %191 = math.tanh %190 : vector<8x32xf32>
    %192 = arith.mulf %185, %191 : vector<8x32xf32>
    %193 = vector.shape_cast %8 : vector<8x1xi1> to vector<8x1xi1>
    %194 = vector.broadcast %193 : vector<8x1xi1> to vector<8x32xi1>
    %195 = arith.select %194, %190, %136 : vector<8x32xi1>, vector<8x32xf32>
    %196 = vector.shape_cast %8 : vector<8x1xi1> to vector<8x1xi1>
    %197 = vector.broadcast %196 : vector<8x1xi1> to vector<8x32xi1>
    %198 = arith.select %197, %192, %139 : vector<8x32xi1>, vector<8x32xf32>
    %cst_31 = arith.constant 0.000000e+00 : f32
    %199 = vector.shape_cast %8 : vector<8x1xi1> to vector<8x1xi1>
    %200 = vector.broadcast %199 : vector<8x1xi1> to vector<8x32xi1>
    %201 = vector.broadcast %cst_31 : f32 to vector<8x32xf32>
    %202 = arith.select %200, %192, %201 : vector<8x32xi1>, vector<8x32xf32>
    %203 = tpu.concatenate %143, %169 in 1 : vector<8x32xf32>, vector<8x32xf32> -> vector<8x64xf32>
    %204 = arith.truncf %203 : vector<8x64xf32> to vector<8x64xbf16>
    %cst_32 = arith.constant dense<0.000000e+00> : vector<8x128xf32>
    %205 = tpu.matmul %204, %24, %cst_32 {dimension_numbers = #tpu.dot_dimension_numbers<[1], [0], [0], [1], [0, 0, 1, 1], [], []>} : vector<8x64xbf16>, vector<64x128xbf16>, vector<8x128xf32> -> vector<8x128xf32>
    %206 = vector.broadcast %25 : vector<1x128xf32> to vector<8x128xf32>
    %207 = arith.addf %205, %206 : vector<8x128xf32>
    %208 = arith.negf %207 : vector<8x128xf32>
    %209 = math.exp %208 : vector<8x128xf32>
    %cst_33 = arith.constant 1.000000e+00 : f32
    %210 = vector.broadcast %cst_33 : f32 to vector<8x128xf32>
    %211 = arith.addf %210, %209 : vector<8x128xf32>
    %212 = arith.divf %210, %211 : vector<8x128xf32>
    %213 = vector.extract_strided_slice %212 {offsets = [0, 0], sizes = [8, 32], strides = [1, 1]} : vector<8x128xf32> to vector<8x32xf32>
    %214 = vector.extract_strided_slice %212 {offsets = [0, 32], sizes = [8, 32], strides = [1, 1]} : vector<8x128xf32> to vector<8x32xf32>
    %215 = vector.extract_strided_slice %212 {offsets = [0, 96], sizes = [8, 32], strides = [1, 1]} : vector<8x128xf32> to vector<8x32xf32>
    %216 = vector.extract_strided_slice %207 {offsets = [0, 64], sizes = [8, 32], strides = [1, 1]} : vector<8x128xf32> to vector<8x32xf32>
    %217 = math.tanh %216 : vector<8x32xf32>
    %218 = arith.mulf %214, %166 : vector<8x32xf32>
    %219 = arith.mulf %213, %217 : vector<8x32xf32>
    %220 = arith.addf %218, %219 : vector<8x32xf32>
    %221 = math.tanh %220 : vector<8x32xf32>
    %222 = arith.mulf %215, %221 : vector<8x32xf32>
    %223 = vector.shape_cast %6 : vector<8x1xi1> to vector<8x1xi1>
    %224 = vector.broadcast %223 : vector<8x1xi1> to vector<8x32xi1>
    %225 = arith.select %224, %220, %166 : vector<8x32xi1>, vector<8x32xf32>
    %226 = vector.shape_cast %6 : vector<8x1xi1> to vector<8x1xi1>
    %227 = vector.broadcast %226 : vector<8x1xi1> to vector<8x32xi1>
    %228 = arith.select %227, %222, %169 : vector<8x32xi1>, vector<8x32xf32>
    %cst_34 = arith.constant 0.000000e+00 : f32
    %229 = vector.shape_cast %6 : vector<8x1xi1> to vector<8x1xi1>
    %230 = vector.broadcast %229 : vector<8x1xi1> to vector<8x32xi1>
    %231 = vector.broadcast %cst_34 : f32 to vector<8x32xf32>
    %232 = arith.select %230, %222, %231 : vector<8x32xi1>, vector<8x32xf32>
    %233 = vector.extract_strided_slice %22 {offsets = [32, 0], sizes = [8, 128], strides = [1, 1]} : vector<64x128xf32> to vector<8x128xf32>
    %234 = arith.truncf %198 : vector<8x32xf32> to vector<8x32xbf16>
    %cst_35 = arith.constant dense<0.000000e+00> : vector<8x128xf32>
    %235 = tpu.matmul %234, %23, %cst_35 {dimension_numbers = #tpu.dot_dimension_numbers<[1], [0], [0], [1], [0, 0, 1, 1], [], []>} : vector<8x32xbf16>, vector<32x128xbf16>, vector<8x128xf32> -> vector<8x128xf32>
    %236 = arith.addf %233, %235 : vector<8x128xf32>
    %237 = arith.negf %236 : vector<8x128xf32>
    %238 = math.exp %237 : vector<8x128xf32>
    %cst_36 = arith.constant 1.000000e+00 : f32
    %239 = vector.broadcast %cst_36 : f32 to vector<8x128xf32>
    %240 = arith.addf %239, %238 : vector<8x128xf32>
    %241 = arith.divf %239, %240 : vector<8x128xf32>
    %242 = vector.extract_strided_slice %241 {offsets = [0, 0], sizes = [8, 32], strides = [1, 1]} : vector<8x128xf32> to vector<8x32xf32>
    %243 = vector.extract_strided_slice %241 {offsets = [0, 32], sizes = [8, 32], strides = [1, 1]} : vector<8x128xf32> to vector<8x32xf32>
    %244 = vector.extract_strided_slice %241 {offsets = [0, 96], sizes = [8, 32], strides = [1, 1]} : vector<8x128xf32> to vector<8x32xf32>
    %245 = vector.extract_strided_slice %236 {offsets = [0, 64], sizes = [8, 32], strides = [1, 1]} : vector<8x128xf32> to vector<8x32xf32>
    %246 = math.tanh %245 : vector<8x32xf32>
    %247 = arith.mulf %243, %195 : vector<8x32xf32>
    %248 = arith.mulf %242, %246 : vector<8x32xf32>
    %249 = arith.addf %247, %248 : vector<8x32xf32>
    %250 = math.tanh %249 : vector<8x32xf32>
    %251 = arith.mulf %244, %250 : vector<8x32xf32>
    %252 = vector.shape_cast %10 : vector<8x1xi1> to vector<8x1xi1>
    %253 = vector.broadcast %252 : vector<8x1xi1> to vector<8x32xi1>
    %254 = arith.select %253, %249, %195 : vector<8x32xi1>, vector<8x32xf32>
    %255 = vector.shape_cast %10 : vector<8x1xi1> to vector<8x1xi1>
    %256 = vector.broadcast %255 : vector<8x1xi1> to vector<8x32xi1>
    %257 = arith.select %256, %251, %198 : vector<8x32xi1>, vector<8x32xf32>
    %cst_37 = arith.constant 0.000000e+00 : f32
    %258 = vector.shape_cast %10 : vector<8x1xi1> to vector<8x1xi1>
    %259 = vector.broadcast %258 : vector<8x1xi1> to vector<8x32xi1>
    %260 = vector.broadcast %cst_37 : f32 to vector<8x32xf32>
    %261 = arith.select %259, %251, %260 : vector<8x32xi1>, vector<8x32xf32>
    %262 = tpu.concatenate %202, %228 in 1 : vector<8x32xf32>, vector<8x32xf32> -> vector<8x64xf32>
    %263 = arith.truncf %262 : vector<8x64xf32> to vector<8x64xbf16>
    %cst_38 = arith.constant dense<0.000000e+00> : vector<8x128xf32>
    %264 = tpu.matmul %263, %24, %cst_38 {dimension_numbers = #tpu.dot_dimension_numbers<[1], [0], [0], [1], [0, 0, 1, 1], [], []>} : vector<8x64xbf16>, vector<64x128xbf16>, vector<8x128xf32> -> vector<8x128xf32>
    %265 = vector.broadcast %25 : vector<1x128xf32> to vector<8x128xf32>
    %266 = arith.addf %264, %265 : vector<8x128xf32>
    %267 = arith.negf %266 : vector<8x128xf32>
    %268 = math.exp %267 : vector<8x128xf32>
    %cst_39 = arith.constant 1.000000e+00 : f32
    %269 = vector.broadcast %cst_39 : f32 to vector<8x128xf32>
    %270 = arith.addf %269, %268 : vector<8x128xf32>
    %271 = arith.divf %269, %270 : vector<8x128xf32>
    %272 = vector.extract_strided_slice %271 {offsets = [0, 0], sizes = [8, 32], strides = [1, 1]} : vector<8x128xf32> to vector<8x32xf32>
    %273 = vector.extract_strided_slice %271 {offsets = [0, 32], sizes = [8, 32], strides = [1, 1]} : vector<8x128xf32> to vector<8x32xf32>
    %274 = vector.extract_strided_slice %271 {offsets = [0, 96], sizes = [8, 32], strides = [1, 1]} : vector<8x128xf32> to vector<8x32xf32>
    %275 = vector.extract_strided_slice %266 {offsets = [0, 64], sizes = [8, 32], strides = [1, 1]} : vector<8x128xf32> to vector<8x32xf32>
    %276 = math.tanh %275 : vector<8x32xf32>
    %277 = arith.mulf %273, %225 : vector<8x32xf32>
    %278 = arith.mulf %272, %276 : vector<8x32xf32>
    %279 = arith.addf %277, %278 : vector<8x32xf32>
    %280 = math.tanh %279 : vector<8x32xf32>
    %281 = arith.mulf %274, %280 : vector<8x32xf32>
    %282 = vector.shape_cast %8 : vector<8x1xi1> to vector<8x1xi1>
    %283 = vector.broadcast %282 : vector<8x1xi1> to vector<8x32xi1>
    %284 = arith.select %283, %279, %225 : vector<8x32xi1>, vector<8x32xf32>
    %285 = vector.shape_cast %8 : vector<8x1xi1> to vector<8x1xi1>
    %286 = vector.broadcast %285 : vector<8x1xi1> to vector<8x32xi1>
    %287 = arith.select %286, %281, %228 : vector<8x32xi1>, vector<8x32xf32>
    %cst_40 = arith.constant 0.000000e+00 : f32
    %288 = vector.shape_cast %8 : vector<8x1xi1> to vector<8x1xi1>
    %289 = vector.broadcast %288 : vector<8x1xi1> to vector<8x32xi1>
    %290 = vector.broadcast %cst_40 : f32 to vector<8x32xf32>
    %291 = arith.select %289, %281, %290 : vector<8x32xi1>, vector<8x32xf32>
    %292 = vector.extract_strided_slice %22 {offsets = [40, 0], sizes = [8, 128], strides = [1, 1]} : vector<64x128xf32> to vector<8x128xf32>
    %293 = arith.truncf %257 : vector<8x32xf32> to vector<8x32xbf16>
    %cst_41 = arith.constant dense<0.000000e+00> : vector<8x128xf32>
    %294 = tpu.matmul %293, %23, %cst_41 {dimension_numbers = #tpu.dot_dimension_numbers<[1], [0], [0], [1], [0, 0, 1, 1], [], []>} : vector<8x32xbf16>, vector<32x128xbf16>, vector<8x128xf32> -> vector<8x128xf32>
    %295 = arith.addf %292, %294 : vector<8x128xf32>
    %296 = arith.negf %295 : vector<8x128xf32>
    %297 = math.exp %296 : vector<8x128xf32>
    %cst_42 = arith.constant 1.000000e+00 : f32
    %298 = vector.broadcast %cst_42 : f32 to vector<8x128xf32>
    %299 = arith.addf %298, %297 : vector<8x128xf32>
    %300 = arith.divf %298, %299 : vector<8x128xf32>
    %301 = vector.extract_strided_slice %300 {offsets = [0, 0], sizes = [8, 32], strides = [1, 1]} : vector<8x128xf32> to vector<8x32xf32>
    %302 = vector.extract_strided_slice %300 {offsets = [0, 32], sizes = [8, 32], strides = [1, 1]} : vector<8x128xf32> to vector<8x32xf32>
    %303 = vector.extract_strided_slice %300 {offsets = [0, 96], sizes = [8, 32], strides = [1, 1]} : vector<8x128xf32> to vector<8x32xf32>
    %304 = vector.extract_strided_slice %295 {offsets = [0, 64], sizes = [8, 32], strides = [1, 1]} : vector<8x128xf32> to vector<8x32xf32>
    %305 = math.tanh %304 : vector<8x32xf32>
    %306 = arith.mulf %302, %254 : vector<8x32xf32>
    %307 = arith.mulf %301, %305 : vector<8x32xf32>
    %308 = arith.addf %306, %307 : vector<8x32xf32>
    %309 = math.tanh %308 : vector<8x32xf32>
    %310 = arith.mulf %303, %309 : vector<8x32xf32>
    %311 = vector.shape_cast %12 : vector<8x1xi1> to vector<8x1xi1>
    %312 = vector.broadcast %311 : vector<8x1xi1> to vector<8x32xi1>
    %313 = arith.select %312, %308, %254 : vector<8x32xi1>, vector<8x32xf32>
    %314 = vector.shape_cast %12 : vector<8x1xi1> to vector<8x1xi1>
    %315 = vector.broadcast %314 : vector<8x1xi1> to vector<8x32xi1>
    %316 = arith.select %315, %310, %257 : vector<8x32xi1>, vector<8x32xf32>
    %cst_43 = arith.constant 0.000000e+00 : f32
    %317 = vector.shape_cast %12 : vector<8x1xi1> to vector<8x1xi1>
    %318 = vector.broadcast %317 : vector<8x1xi1> to vector<8x32xi1>
    %319 = vector.broadcast %cst_43 : f32 to vector<8x32xf32>
    %320 = arith.select %318, %310, %319 : vector<8x32xi1>, vector<8x32xf32>
    %321 = tpu.concatenate %261, %287 in 1 : vector<8x32xf32>, vector<8x32xf32> -> vector<8x64xf32>
    %322 = arith.truncf %321 : vector<8x64xf32> to vector<8x64xbf16>
    %cst_44 = arith.constant dense<0.000000e+00> : vector<8x128xf32>
    %323 = tpu.matmul %322, %24, %cst_44 {dimension_numbers = #tpu.dot_dimension_numbers<[1], [0], [0], [1], [0, 0, 1, 1], [], []>} : vector<8x64xbf16>, vector<64x128xbf16>, vector<8x128xf32> -> vector<8x128xf32>
    %324 = vector.broadcast %25 : vector<1x128xf32> to vector<8x128xf32>
    %325 = arith.addf %323, %324 : vector<8x128xf32>
    %326 = arith.negf %325 : vector<8x128xf32>
    %327 = math.exp %326 : vector<8x128xf32>
    %cst_45 = arith.constant 1.000000e+00 : f32
    %328 = vector.broadcast %cst_45 : f32 to vector<8x128xf32>
    %329 = arith.addf %328, %327 : vector<8x128xf32>
    %330 = arith.divf %328, %329 : vector<8x128xf32>
    %331 = vector.extract_strided_slice %330 {offsets = [0, 0], sizes = [8, 32], strides = [1, 1]} : vector<8x128xf32> to vector<8x32xf32>
    %332 = vector.extract_strided_slice %330 {offsets = [0, 32], sizes = [8, 32], strides = [1, 1]} : vector<8x128xf32> to vector<8x32xf32>
    %333 = vector.extract_strided_slice %330 {offsets = [0, 96], sizes = [8, 32], strides = [1, 1]} : vector<8x128xf32> to vector<8x32xf32>
    %334 = vector.extract_strided_slice %325 {offsets = [0, 64], sizes = [8, 32], strides = [1, 1]} : vector<8x128xf32> to vector<8x32xf32>
    %335 = math.tanh %334 : vector<8x32xf32>
    %336 = arith.mulf %332, %284 : vector<8x32xf32>
    %337 = arith.mulf %331, %335 : vector<8x32xf32>
    %338 = arith.addf %336, %337 : vector<8x32xf32>
    %339 = math.tanh %338 : vector<8x32xf32>
    %340 = arith.mulf %333, %339 : vector<8x32xf32>
    %341 = vector.shape_cast %10 : vector<8x1xi1> to vector<8x1xi1>
    %342 = vector.broadcast %341 : vector<8x1xi1> to vector<8x32xi1>
    %343 = arith.select %342, %338, %284 : vector<8x32xi1>, vector<8x32xf32>
    %344 = vector.shape_cast %10 : vector<8x1xi1> to vector<8x1xi1>
    %345 = vector.broadcast %344 : vector<8x1xi1> to vector<8x32xi1>
    %346 = arith.select %345, %340, %287 : vector<8x32xi1>, vector<8x32xf32>
    %cst_46 = arith.constant 0.000000e+00 : f32
    %347 = vector.shape_cast %10 : vector<8x1xi1> to vector<8x1xi1>
    %348 = vector.broadcast %347 : vector<8x1xi1> to vector<8x32xi1>
    %349 = vector.broadcast %cst_46 : f32 to vector<8x32xf32>
    %350 = arith.select %348, %340, %349 : vector<8x32xi1>, vector<8x32xf32>
    %351 = vector.extract_strided_slice %22 {offsets = [48, 0], sizes = [8, 128], strides = [1, 1]} : vector<64x128xf32> to vector<8x128xf32>
    %352 = arith.truncf %316 : vector<8x32xf32> to vector<8x32xbf16>
    %cst_47 = arith.constant dense<0.000000e+00> : vector<8x128xf32>
    %353 = tpu.matmul %352, %23, %cst_47 {dimension_numbers = #tpu.dot_dimension_numbers<[1], [0], [0], [1], [0, 0, 1, 1], [], []>} : vector<8x32xbf16>, vector<32x128xbf16>, vector<8x128xf32> -> vector<8x128xf32>
    %354 = arith.addf %351, %353 : vector<8x128xf32>
    %355 = arith.negf %354 : vector<8x128xf32>
    %356 = math.exp %355 : vector<8x128xf32>
    %cst_48 = arith.constant 1.000000e+00 : f32
    %357 = vector.broadcast %cst_48 : f32 to vector<8x128xf32>
    %358 = arith.addf %357, %356 : vector<8x128xf32>
    %359 = arith.divf %357, %358 : vector<8x128xf32>
    %360 = vector.extract_strided_slice %359 {offsets = [0, 0], sizes = [8, 32], strides = [1, 1]} : vector<8x128xf32> to vector<8x32xf32>
    %361 = vector.extract_strided_slice %359 {offsets = [0, 32], sizes = [8, 32], strides = [1, 1]} : vector<8x128xf32> to vector<8x32xf32>
    %362 = vector.extract_strided_slice %359 {offsets = [0, 96], sizes = [8, 32], strides = [1, 1]} : vector<8x128xf32> to vector<8x32xf32>
    %363 = vector.extract_strided_slice %354 {offsets = [0, 64], sizes = [8, 32], strides = [1, 1]} : vector<8x128xf32> to vector<8x32xf32>
    %364 = math.tanh %363 : vector<8x32xf32>
    %365 = arith.mulf %361, %313 : vector<8x32xf32>
    %366 = arith.mulf %360, %364 : vector<8x32xf32>
    %367 = arith.addf %365, %366 : vector<8x32xf32>
    %368 = math.tanh %367 : vector<8x32xf32>
    %369 = arith.mulf %362, %368 : vector<8x32xf32>
    %370 = vector.shape_cast %14 : vector<8x1xi1> to vector<8x1xi1>
    %371 = vector.broadcast %370 : vector<8x1xi1> to vector<8x32xi1>
    %372 = arith.select %371, %367, %313 : vector<8x32xi1>, vector<8x32xf32>
    %373 = vector.shape_cast %14 : vector<8x1xi1> to vector<8x1xi1>
    %374 = vector.broadcast %373 : vector<8x1xi1> to vector<8x32xi1>
    %375 = arith.select %374, %369, %316 : vector<8x32xi1>, vector<8x32xf32>
    %cst_49 = arith.constant 0.000000e+00 : f32
    %376 = vector.shape_cast %14 : vector<8x1xi1> to vector<8x1xi1>
    %377 = vector.broadcast %376 : vector<8x1xi1> to vector<8x32xi1>
    %378 = vector.broadcast %cst_49 : f32 to vector<8x32xf32>
    %379 = arith.select %377, %369, %378 : vector<8x32xi1>, vector<8x32xf32>
    %380 = tpu.concatenate %320, %346 in 1 : vector<8x32xf32>, vector<8x32xf32> -> vector<8x64xf32>
    %381 = arith.truncf %380 : vector<8x64xf32> to vector<8x64xbf16>
    %cst_50 = arith.constant dense<0.000000e+00> : vector<8x128xf32>
    %382 = tpu.matmul %381, %24, %cst_50 {dimension_numbers = #tpu.dot_dimension_numbers<[1], [0], [0], [1], [0, 0, 1, 1], [], []>} : vector<8x64xbf16>, vector<64x128xbf16>, vector<8x128xf32> -> vector<8x128xf32>
    %383 = vector.broadcast %25 : vector<1x128xf32> to vector<8x128xf32>
    %384 = arith.addf %382, %383 : vector<8x128xf32>
    %385 = arith.negf %384 : vector<8x128xf32>
    %386 = math.exp %385 : vector<8x128xf32>
    %cst_51 = arith.constant 1.000000e+00 : f32
    %387 = vector.broadcast %cst_51 : f32 to vector<8x128xf32>
    %388 = arith.addf %387, %386 : vector<8x128xf32>
    %389 = arith.divf %387, %388 : vector<8x128xf32>
    %390 = vector.extract_strided_slice %389 {offsets = [0, 0], sizes = [8, 32], strides = [1, 1]} : vector<8x128xf32> to vector<8x32xf32>
    %391 = vector.extract_strided_slice %389 {offsets = [0, 32], sizes = [8, 32], strides = [1, 1]} : vector<8x128xf32> to vector<8x32xf32>
    %392 = vector.extract_strided_slice %389 {offsets = [0, 96], sizes = [8, 32], strides = [1, 1]} : vector<8x128xf32> to vector<8x32xf32>
    %393 = vector.extract_strided_slice %384 {offsets = [0, 64], sizes = [8, 32], strides = [1, 1]} : vector<8x128xf32> to vector<8x32xf32>
    %394 = math.tanh %393 : vector<8x32xf32>
    %395 = arith.mulf %391, %343 : vector<8x32xf32>
    %396 = arith.mulf %390, %394 : vector<8x32xf32>
    %397 = arith.addf %395, %396 : vector<8x32xf32>
    %398 = math.tanh %397 : vector<8x32xf32>
    %399 = arith.mulf %392, %398 : vector<8x32xf32>
    %400 = vector.shape_cast %12 : vector<8x1xi1> to vector<8x1xi1>
    %401 = vector.broadcast %400 : vector<8x1xi1> to vector<8x32xi1>
    %402 = arith.select %401, %397, %343 : vector<8x32xi1>, vector<8x32xf32>
    %403 = vector.shape_cast %12 : vector<8x1xi1> to vector<8x1xi1>
    %404 = vector.broadcast %403 : vector<8x1xi1> to vector<8x32xi1>
    %405 = arith.select %404, %399, %346 : vector<8x32xi1>, vector<8x32xf32>
    %cst_52 = arith.constant 0.000000e+00 : f32
    %406 = vector.shape_cast %12 : vector<8x1xi1> to vector<8x1xi1>
    %407 = vector.broadcast %406 : vector<8x1xi1> to vector<8x32xi1>
    %408 = vector.broadcast %cst_52 : f32 to vector<8x32xf32>
    %409 = arith.select %407, %399, %408 : vector<8x32xi1>, vector<8x32xf32>
    %410 = vector.extract_strided_slice %22 {offsets = [56, 0], sizes = [8, 128], strides = [1, 1]} : vector<64x128xf32> to vector<8x128xf32>
    %411 = arith.truncf %375 : vector<8x32xf32> to vector<8x32xbf16>
    %cst_53 = arith.constant dense<0.000000e+00> : vector<8x128xf32>
    %412 = tpu.matmul %411, %23, %cst_53 {dimension_numbers = #tpu.dot_dimension_numbers<[1], [0], [0], [1], [0, 0, 1, 1], [], []>} : vector<8x32xbf16>, vector<32x128xbf16>, vector<8x128xf32> -> vector<8x128xf32>
    %413 = arith.addf %410, %412 : vector<8x128xf32>
    %414 = arith.negf %413 : vector<8x128xf32>
    %415 = math.exp %414 : vector<8x128xf32>
    %cst_54 = arith.constant 1.000000e+00 : f32
    %416 = vector.broadcast %cst_54 : f32 to vector<8x128xf32>
    %417 = arith.addf %416, %415 : vector<8x128xf32>
    %418 = arith.divf %416, %417 : vector<8x128xf32>
    %419 = vector.extract_strided_slice %418 {offsets = [0, 0], sizes = [8, 32], strides = [1, 1]} : vector<8x128xf32> to vector<8x32xf32>
    %420 = vector.extract_strided_slice %418 {offsets = [0, 32], sizes = [8, 32], strides = [1, 1]} : vector<8x128xf32> to vector<8x32xf32>
    %421 = vector.extract_strided_slice %418 {offsets = [0, 96], sizes = [8, 32], strides = [1, 1]} : vector<8x128xf32> to vector<8x32xf32>
    %422 = vector.extract_strided_slice %413 {offsets = [0, 64], sizes = [8, 32], strides = [1, 1]} : vector<8x128xf32> to vector<8x32xf32>
    %423 = math.tanh %422 : vector<8x32xf32>
    %424 = arith.mulf %420, %372 : vector<8x32xf32>
    %425 = arith.mulf %419, %423 : vector<8x32xf32>
    %426 = arith.addf %424, %425 : vector<8x32xf32>
    %427 = math.tanh %426 : vector<8x32xf32>
    %428 = arith.mulf %421, %427 : vector<8x32xf32>
    %cst_55 = arith.constant 0.000000e+00 : f32
    %429 = vector.shape_cast %16 : vector<8x1xi1> to vector<8x1xi1>
    %430 = vector.broadcast %429 : vector<8x1xi1> to vector<8x32xi1>
    %431 = vector.broadcast %cst_55 : f32 to vector<8x32xf32>
    %432 = arith.select %430, %428, %431 : vector<8x32xi1>, vector<8x32xf32>
    %433 = tpu.concatenate %379, %405 in 1 : vector<8x32xf32>, vector<8x32xf32> -> vector<8x64xf32>
    %434 = arith.truncf %433 : vector<8x64xf32> to vector<8x64xbf16>
    %cst_56 = arith.constant dense<0.000000e+00> : vector<8x128xf32>
    %435 = tpu.matmul %434, %24, %cst_56 {dimension_numbers = #tpu.dot_dimension_numbers<[1], [0], [0], [1], [0, 0, 1, 1], [], []>} : vector<8x64xbf16>, vector<64x128xbf16>, vector<8x128xf32> -> vector<8x128xf32>
    %436 = vector.broadcast %25 : vector<1x128xf32> to vector<8x128xf32>
    %437 = arith.addf %435, %436 : vector<8x128xf32>
    %438 = arith.negf %437 : vector<8x128xf32>
    %439 = math.exp %438 : vector<8x128xf32>
    %cst_57 = arith.constant 1.000000e+00 : f32
    %440 = vector.broadcast %cst_57 : f32 to vector<8x128xf32>
    %441 = arith.addf %440, %439 : vector<8x128xf32>
    %442 = arith.divf %440, %441 : vector<8x128xf32>
    %443 = vector.extract_strided_slice %442 {offsets = [0, 0], sizes = [8, 32], strides = [1, 1]} : vector<8x128xf32> to vector<8x32xf32>
    %444 = vector.extract_strided_slice %442 {offsets = [0, 32], sizes = [8, 32], strides = [1, 1]} : vector<8x128xf32> to vector<8x32xf32>
    %445 = vector.extract_strided_slice %442 {offsets = [0, 96], sizes = [8, 32], strides = [1, 1]} : vector<8x128xf32> to vector<8x32xf32>
    %446 = vector.extract_strided_slice %437 {offsets = [0, 64], sizes = [8, 32], strides = [1, 1]} : vector<8x128xf32> to vector<8x32xf32>
    %447 = math.tanh %446 : vector<8x32xf32>
    %448 = arith.mulf %444, %402 : vector<8x32xf32>
    %449 = arith.mulf %443, %447 : vector<8x32xf32>
    %450 = arith.addf %448, %449 : vector<8x32xf32>
    %451 = math.tanh %450 : vector<8x32xf32>
    %452 = arith.mulf %445, %451 : vector<8x32xf32>
    %453 = vector.shape_cast %14 : vector<8x1xi1> to vector<8x1xi1>
    %454 = vector.broadcast %453 : vector<8x1xi1> to vector<8x32xi1>
    %455 = arith.select %454, %450, %402 : vector<8x32xi1>, vector<8x32xf32>
    %456 = vector.shape_cast %14 : vector<8x1xi1> to vector<8x1xi1>
    %457 = vector.broadcast %456 : vector<8x1xi1> to vector<8x32xi1>
    %458 = arith.select %457, %452, %405 : vector<8x32xi1>, vector<8x32xf32>
    %cst_58 = arith.constant 0.000000e+00 : f32
    %459 = vector.shape_cast %14 : vector<8x1xi1> to vector<8x1xi1>
    %460 = vector.broadcast %459 : vector<8x1xi1> to vector<8x32xi1>
    %461 = vector.broadcast %cst_58 : f32 to vector<8x32xf32>
    %462 = arith.select %460, %452, %461 : vector<8x32xi1>, vector<8x32xf32>
    %463 = tpu.concatenate %432, %458 in 1 : vector<8x32xf32>, vector<8x32xf32> -> vector<8x64xf32>
    %464 = arith.truncf %463 : vector<8x64xf32> to vector<8x64xbf16>
    %cst_59 = arith.constant dense<0.000000e+00> : vector<8x128xf32>
    %465 = tpu.matmul %464, %24, %cst_59 {dimension_numbers = #tpu.dot_dimension_numbers<[1], [0], [0], [1], [0, 0, 1, 1], [], []>} : vector<8x64xbf16>, vector<64x128xbf16>, vector<8x128xf32> -> vector<8x128xf32>
    %466 = vector.broadcast %25 : vector<1x128xf32> to vector<8x128xf32>
    %467 = arith.addf %465, %466 : vector<8x128xf32>
    %468 = arith.negf %467 : vector<8x128xf32>
    %469 = math.exp %468 : vector<8x128xf32>
    %cst_60 = arith.constant 1.000000e+00 : f32
    %470 = vector.broadcast %cst_60 : f32 to vector<8x128xf32>
    %471 = arith.addf %470, %469 : vector<8x128xf32>
    %472 = arith.divf %470, %471 : vector<8x128xf32>
    %473 = vector.extract_strided_slice %472 {offsets = [0, 0], sizes = [8, 32], strides = [1, 1]} : vector<8x128xf32> to vector<8x32xf32>
    %474 = vector.extract_strided_slice %472 {offsets = [0, 32], sizes = [8, 32], strides = [1, 1]} : vector<8x128xf32> to vector<8x32xf32>
    %475 = vector.extract_strided_slice %472 {offsets = [0, 96], sizes = [8, 32], strides = [1, 1]} : vector<8x128xf32> to vector<8x32xf32>
    %476 = vector.extract_strided_slice %467 {offsets = [0, 64], sizes = [8, 32], strides = [1, 1]} : vector<8x128xf32> to vector<8x32xf32>
    %477 = math.tanh %476 : vector<8x32xf32>
    %478 = arith.mulf %474, %455 : vector<8x32xf32>
    %479 = arith.mulf %473, %477 : vector<8x32xf32>
    %480 = arith.addf %478, %479 : vector<8x32xf32>
    %481 = math.tanh %480 : vector<8x32xf32>
    %482 = arith.mulf %475, %481 : vector<8x32xf32>
    %cst_61 = arith.constant 0.000000e+00 : f32
    %483 = vector.shape_cast %16 : vector<8x1xi1> to vector<8x1xi1>
    %484 = vector.broadcast %483 : vector<8x1xi1> to vector<8x32xi1>
    %485 = vector.broadcast %cst_61 : f32 to vector<8x32xf32>
    %486 = arith.select %484, %482, %485 : vector<8x32xi1>, vector<8x32xf32>
    %487 = tpu.concatenate %114, %173, %232, %291, %350, %409, %462, %486 in 0 : vector<8x32xf32>, vector<8x32xf32>, vector<8x32xf32>, vector<8x32xf32>, vector<8x32xf32>, vector<8x32xf32>, vector<8x32xf32>, vector<8x32xf32> -> vector<64x32xf32>
    %488 = arith.truncf %487 : vector<64x32xf32> to vector<64x32xbf16>
    %c0_62 = arith.constant 0 : index
    %c0_63 = arith.constant 0 : index
    %489 = vector.load %arg8[%c0_62, %c0_63] : memref<32x128xbf16, #tpu.memory_space<vmem>>, vector<32x128xbf16>
    %cst_64 = arith.constant dense<0.000000e+00> : vector<64x128xf32>
    %490 = tpu.matmul %488, %489, %cst_64 {dimension_numbers = #tpu.dot_dimension_numbers<[1], [0], [0], [1], [0, 0, 1, 1], [], []>} : vector<64x32xbf16>, vector<32x128xbf16>, vector<64x128xf32> -> vector<64x128xf32>
    %c0_65 = arith.constant 0 : index
    %c0_66 = arith.constant 0 : index
    %491 = vector.load %arg9[%c0_65, %c0_66] : memref<1x128xf32, #tpu.memory_space<vmem>>, vector<1x128xf32>
    %492 = vector.broadcast %491 : vector<1x128xf32> to vector<64x128xf32>
    %493 = arith.addf %490, %492 : vector<64x128xf32>
    %c0_67 = arith.constant 0 : index
    %c0_68 = arith.constant 0 : index
    %494 = vector.load %arg10[%c0_67, %c0_68] : memref<64x128xf32, #tpu.memory_space<vmem>>, vector<64x128xf32>
    tpu.vector_store %arg10[%c0_67, %c0_68], %493 {strides = array<i32>} : memref<64x128xf32, #tpu.memory_space<vmem>>, vector<64x128xf32>,
    return
  }
  func.func @transform_0(%arg0: i32) -> (i32, i32) {
    %c0_i32 = arith.constant 0 : i32
    %c0_i32_0 = arith.constant 0 : i32
    %c0_i32_1 = arith.constant 0 : i32
    return %c0_i32, %c0_i32_0 : i32, i32
  }
  func.func @transform_1(%arg0: i32) -> (i32, i32) {
    %c0_i32 = arith.constant 0 : i32
    %c0_i32_0 = arith.constant 0 : i32
    %c0_i32_1 = arith.constant 0 : i32
    return %c0_i32, %c0_i32_0 : i32, i32
  }
  func.func @transform_2(%arg0: i32) -> (i32, i32) {
    %c0_i32 = arith.constant 0 : i32
    %c0_i32_0 = arith.constant 0 : i32
    %c0_i32_1 = arith.constant 0 : i32
    return %c0_i32, %c0_i32_0 : i32, i32
  }
  func.func @transform_3(%arg0: i32) -> (i32, i32) {
    %c0_i32 = arith.constant 0 : i32
    %c0_i32_0 = arith.constant 0 : i32
    %c0_i32_1 = arith.constant 0 : i32
    return %c0_i32, %c0_i32_0 : i32, i32
  }
  func.func @transform_4(%arg0: i32) -> (i32, i32) {
    %c0_i32 = arith.constant 0 : i32
    %c0_i32_0 = arith.constant 0 : i32
    %c0_i32_1 = arith.constant 0 : i32
    return %c0_i32, %c0_i32_0 : i32, i32
  }
  func.func @transform_5(%arg0: i32) -> (i32, i32) {
    %c0_i32 = arith.constant 0 : i32
    %c0_i32_0 = arith.constant 0 : i32
    %c0_i32_1 = arith.constant 0 : i32
    return %c0_i32, %c0_i32_0 : i32, i32
  }
  func.func @transform_6(%arg0: i32) -> (i32, i32) {
    %c0_i32 = arith.constant 0 : i32
    %c0_i32_0 = arith.constant 0 : i32
    %c0_i32_1 = arith.constant 0 : i32
    return %c0_i32, %c0_i32_0 : i32, i32
  }
  func.func @transform_7(%arg0: i32) -> (i32, i32) {
    %c0_i32 = arith.constant 0 : i32
    %c0_i32_0 = arith.constant 0 : i32
    %c0_i32_1 = arith.constant 0 : i32
    return %c0_i32, %c0_i32_0 : i32, i32
  }
  func.func @transform_8(%arg0: i32) -> (i32, i32) {
    %c0_i32 = arith.constant 0 : i32
    %c0_i32_0 = arith.constant 0 : i32
    %c0_i32_1 = arith.constant 0 : i32
    return %c0_i32, %c0_i32_0 : i32, i32
  }
  func.func @transform_9(%arg0: i32) -> (i32, i32) {
    %c0_i32 = arith.constant 0 : i32
    %c0_i32_0 = arith.constant 0 : i32
    %c0_i32_1 = arith.constant 0 : i32
    return %c0_i32, %c0_i32_0 : i32, i32
  }
}

</mosaic_0001>

<llo_original>
// kernel: mma_rnn_forward.1
$region0: #{mma_rnn_forward.1}
  #allocation0 [shape = 'u32[]', space=smem, size = 0x4, offset = 0x4, fixed_abs, tag = 'smem constant byte address 0x4 - core index']
  #allocation1 [shape = 'u32[72,128]{1,0:T(1,128)}', space=vmem, size = 0x9000, scoped, tag = 'internal scratch']
  %s0 = inlined_call_operand.vmem [shape: bf16[64,4], index: 0, kind: input, shape index: {}]
  %s1 = inlined_call_operand.vmem [shape: s32[8,1], index: 1, kind: input, shape index: {}]
  %s2 = inlined_call_operand.vmem [shape: bf16[4,128], index: 2, kind: input, shape index: {}]
  %s3 = inlined_call_operand.vmem [shape: bf16[32,128], index: 3, kind: input, shape index: {}]
  %s4 = inlined_call_operand.vmem [shape: f32[1,128], index: 4, kind: input, shape index: {}]
  %s5 = inlined_call_operand.vmem [shape: bf16[64,128], index: 5, kind: input, shape index: {}]
  %s6 = inlined_call_operand.vmem [shape: f32[1,128], index: 6, kind: input, shape index: {}]
  %s7 = inlined_call_operand.vmem [shape: bf16[32,128], index: 7, kind: input, shape index: {}]
  %s8 = inlined_call_operand.vmem [shape: f32[1,128], index: 8, kind: input, shape index: {}]
  %s9 = inlined_call_operand.vmem [shape: f32[64,128], index: 9, kind: output, shape index: {}]
  %s10 = sld [smem:[#allocation0]]
  $region46: #{mma_rnn_forward.1} parent=0
    _
  %s12 = ssub.s32 1, %s10
  %s13 = scalar_select 0, %s12, %s10
  // Predicated region
  $region2: #{mma_rnn_forward.1} parent=0 // pred_check
    _
  $region3: #{mma_rnn_forward.1} parent=0 // pred_check_branch
    %15 = sbr.rel (0) target = $region5
  $region4: #{mma_rnn_forward.1} parent=0 // pred_region
    _
  $region5: #{mma_rnn_forward.1} parent=0 // pred_fallthru
    _
  // Predicated region
  $region6: #{mma_rnn_forward.1} parent=0 // pred_check
    _
  $region7: #{mma_rnn_forward.1} parent=0 // pred_check_branch
    %17 = sbr.rel (0) target = $region9
  $region8: #{mma_rnn_forward.1} parent=0 // pred_region
    _
  $region9: #{mma_rnn_forward.1} parent=0 // pred_fallthru
    _
  // Predicated region
  $region10: #{mma_rnn_forward.1} parent=0 // pred_check
    _
  $region11: #{mma_rnn_forward.1} parent=0 // pred_check_branch
    %19 = sbr.rel (0) target = $region13
  $region12: #{mma_rnn_forward.1} parent=0 // pred_region
    _
  $region13: #{mma_rnn_forward.1} parent=0 // pred_fallthru
    _
  // Predicated region
  $region14: #{mma_rnn_forward.1} parent=0 // pred_check
    _
  $region15: #{mma_rnn_forward.1} parent=0 // pred_check_branch
    %21 = sbr.rel (0) target = $region17
  $region16: #{mma_rnn_forward.1} parent=0 // pred_region
    _
  $region17: #{mma_rnn_forward.1} parent=0 // pred_fallthru
    _
  // Predicated region
  $region18: #{mma_rnn_forward.1} parent=0 // pred_check
    _
  $region19: #{mma_rnn_forward.1} parent=0 // pred_check_branch
    %23 = sbr.rel (0) target = $region21
  $region20: #{mma_rnn_forward.1} parent=0 // pred_region
    _
  $region21: #{mma_rnn_forward.1} parent=0 // pred_fallthru
    _
  // Predicated region
  $region22: #{mma_rnn_forward.1} parent=0 // pred_check
    _
  $region23: #{mma_rnn_forward.1} parent=0 // pred_check_branch
    %25 = sbr.rel (0) target = $region25
  $region24: #{mma_rnn_forward.1} parent=0 // pred_region
    _
  $region25: #{mma_rnn_forward.1} parent=0 // pred_fallthru
    _
  // Predicated region
  $region26: #{mma_rnn_forward.1} parent=0 // pred_check
    _
  $region27: #{mma_rnn_forward.1} parent=0 // pred_check_branch
    %27 = sbr.rel (0) target = $region29
  $region28: #{mma_rnn_forward.1} parent=0 // pred_region
    _
  $region29: #{mma_rnn_forward.1} parent=0 // pred_fallthru
    _
  // Predicated region
  $region30: #{mma_rnn_forward.1} parent=0 // pred_check
    _
  $region31: #{mma_rnn_forward.1} parent=0 // pred_check_branch
    %29 = sbr.rel (0) target = $region33
  $region32: #{mma_rnn_forward.1} parent=0 // pred_region
    _
  $region33: #{mma_rnn_forward.1} parent=0 // pred_fallthru
    _
  // Predicated region
  $region34: #{mma_rnn_forward.1} parent=0 // pred_check
    _
  $region35: #{mma_rnn_forward.1} parent=0 // pred_check_branch
    %31 = sbr.rel (0) target = $region37
  $region36: #{mma_rnn_forward.1} parent=0 // pred_region
    _
  $region37: #{mma_rnn_forward.1} parent=0 // pred_fallthru
    _
  %v33 = vld [vmem:[%s1] sm:$0xff]
  %vm34 = vcmp.gt.s32.totalorder %v33, 0
  %vm35 = vcmp.gt.s32.totalorder %v33, 1
  %vm36 = vcmp.gt.s32.totalorder %v33, 2
  %vm37 = vcmp.gt.s32.totalorder %v33, 3
  %vm38 = vcmp.gt.s32.totalorder %v33, 4
  %vm39 = vcmp.gt.s32.totalorder %v33, 5
  %vm40 = vcmp.gt.s32.totalorder %v33, 6
  %vm41 = vcmp.gt.s32.totalorder %v33, 7
  %v42 = vld [vmem:[%s4] sm:$0x1]
  %v43 = vld [vmem:[%s0] sm:$0xf]
  %v44 = vld [vmem:[%s0 + $0x4] sm:$0xf]
  %v45 = vld [vmem:[%s0 + $0x8] sm:$0xf]
  %v46 = vld [vmem:[%s0 + $0xc] sm:$0xf]
  %v47 = vld [vmem:[%s0 + $0x10] sm:$0xf]
  %v48 = vld [vmem:[%s0 + $0x14] sm:$0xf]
  %v49 = vld [vmem:[%s0 + $0x18] sm:$0xf]
  %v50 = vld [vmem:[%s0 + $0x1c] sm:$0xf]
  %v51 = vld [vmem:[%s2] sm:$0x3]
  %v53 = vperm.slane %v42, 0
  %v63 = vunpack.c.l.b16 %v43
  %v64 = vunpack.c.l.b16 %v44
  %v65 = vunpack.c.l.b16 %v45
  %v66 = vunpack.c.l.b16 %v46
  %v67 = vunpack.c.l.b16 %v47
  %v68 = vunpack.c.l.b16 %v48
  %v69 = vunpack.c.l.b16 %v49
  %v70 = vunpack.c.l.b16 %v50
  %v71 = vpack.c.b16 %v64, %v63
  %v72 = vpack.c.b16 %v66, %v65
  %v73 = vpack.c.b16 %v68, %v67
  %v74 = vpack.c.b16 %v70, %v69
  %vm75 = vcmask 31744
  %v77 = vsel %vm75, %v71, 0
  %v80 = vsel %vm75, %v72, 0
  %v83 = vsel %vm75, %v73, 0
  %v86 = vsel %vm75, %v74, 0
  %vm88 = vcmask 1041408
  %v90 = vsel %vm88, %v51, 0
  %92 = vmatpush.bf16.msra.mxu0 0
  %93 = vmatpush.bf16.msra.mxu0 0
  %94 = vmatpush.bf16.msra.mxu0 0
  %95 = vmatpush.bf16.msra.mxu0 0
  %96 = vmatpush.bf16.msra.mxu0 0
  %97 = vmatpush.bf16.msra.mxu0 0
  %98 = vmatpush.bf16.msra.mxu0 0
  %99 = vmatpush.bf16.msra.mxu0 %v90
  %100 = vmatmul.bf16.gmra.mxu0 %v77
  %v101 = vpop.f32.mrf.mxu0
  %v102 = vadd.f32 %v53, %v101
  %v103 = vpop.f32.mrf.mxu0
  %v104 = vadd.f32 %v53, %v103
  %105 = vmatmul.bf16.gmra.mxu0 %v80
  %v106 = vpop.f32.mrf.mxu0
  %v107 = vadd.f32 %v53, %v106
  %v108 = vpop.f32.mrf.mxu0
  %v109 = vadd.f32 %v53, %v108
  %110 = vmatmul.bf16.gmra.mxu0 %v83
  %v111 = vpop.f32.mrf.mxu0
  %v112 = vadd.f32 %v53, %v111
  %v113 = vpop.f32.mrf.mxu0
  %v114 = vadd.f32 %v53, %v113
  %115 = vmatmul.bf16.gmra.mxu0 %v86
  %v116 = vpop.f32.mrf.mxu0
  %v117 = vadd.f32 %v53, %v116
  %v118 = vpop.f32.mrf.mxu0
  %v119 = vadd.f32 %v53, %v118
  %120 = vdwg.mxu0
  %v121 = vld [vmem:[%s3] sm:$0xf]
  %v122 = vld [vmem:[%s3 + $0x4] sm:$0xf]
  %v123 = vld [vmem:[%s3 + $0x8] sm:$0xf]
  %v124 = vld [vmem:[%s3 + $0xc] sm:$0xf]
  %v125 = vld [vmem:[%s5] sm:$0xf]
  %v126 = vld [vmem:[%s5 + $0x4] sm:$0xf]
  %v127 = vld [vmem:[%s5 + $0x8] sm:$0xf]
  %v128 = vld [vmem:[%s5 + $0xc] sm:$0xf]
  %v129 = vld [vmem:[%s5 + $0x10] sm:$0xf]
  %v130 = vld [vmem:[%s5 + $0x14] sm:$0xf]
  %v131 = vld [vmem:[%s5 + $0x18] sm:$0xf]
  %v132 = vld [vmem:[%s5 + $0x1c] sm:$0xf]
  %v133 = vld [vmem:[%s6] sm:$0x1]
  %v138 = vunpack.c.l.b16 %v121
  %v139 = vunpack.c.l.b16 %v122
  %v140 = vunpack.c.l.b16 %v123
  %v141 = vunpack.c.l.b16 %v124
  %v142 = vpack.c.b16 %v139, %v138
  %v143 = vpack.c.b16 %v141, %v140
  %vm146 = vcmask 261120
  %v148 = vsel %vm146, 0, 0
  %150 = vmatpush.bf16.msra.mxu0 0
  %151 = vmatpush.bf16.msra.mxu0 0
  %152 = vmatpush.bf16.msra.mxu0 0
  %153 = vmatpush.bf16.msra.mxu0 0
  %154 = vmatpush.bf16.msra.mxu0 0
  %155 = vmatpush.bf16.msra.mxu0 0
  %156 = vmatpush.bf16.msra.mxu0 %v143
  %157 = vmatpush.bf16.msra.mxu0 %v142
  %158 = vmatmul.bf16.gmra.mxu0 %v148
  %v159 = vpop.f32.mrf.mxu0
  %v160 = vadd.f32 0.0, %v159
  %v161 = vpop.f32.mrf.mxu0
  %162 = vdwg.mxu0
  %v163 = vadd.f32 %v102, %v160
  %v164 = vxor.u32 %v163, 2147483648
  %v165 = vmul.f32 %v164, 1.442695
  %v166 = vpow.pop %v165
  %v167 = vadd.f32 %v166, 1.0
  %v168 = vrcp.pop %v167
  %v169 = vmul.f32 %v167, %v168
  %v170 = vsub.f32 1.0, %v169
  %v171 = vmul.f32 %v168, %v170
  %v172 = vadd.f32 %v168, %v171
  %vm173 = vweird.f32 %v167
  %vm174 = vweird.f32 %v168
  %vm175 = vmor %vm173, %vm174
  %v176 = vsel %vm175, %v168, %v172
  %v177 = vand.u32 2147483647, %v167
  %vm178 = vcmp.eq.f32.partialorder %v177, 8.507059e+37
  %v179 = vand.u32 %v167, 2147483648
  %v180 = vor.u32 1.1754944e-38, %v179
  %v181 = vsel %vm178, %v180, %v176
  %v182 = vmul.f32 1.0, %v181
  %v183 = vtanh.pop %v163
  %v184 = vmul.f32 %v182, 0.0
  %186 = vrot.lane.b32.xlu0 %v183, 64
  %v187 = vpop.permute.xlu0 %186
  %v189 = vmul.f32 %v182, %v187
  %191 = vrot.lane.b32.xlu0 %v189, 32
  %v192 = vpop.permute.xlu0 %191
  %v194 = vadd.f32 %v184, %v192
  %v195 = vtanh.pop %v194
  %197 = vrot.lane.b32.xlu0 %v195, 64
  %v198 = vpop.permute.xlu0 %197
  %v200 = vmul.f32 %v182, %v198
  %v201 = vsel %vm34, 1, 0
  %202 = vset.pattern.permute.xlu0 0
  %203 = vperm.xlu0 %202, %v201
  %v204 = vpop.permute.xlu0 %203
  %vm205 = vcmp.eq.s32.totalorder %v204, 1
  %v206 = vsel %vm205, %v194, 0.0
  %v207 = vsel %vm205, %v200, 0.0
  %v208 = vpack.c.bf16 %v207, %v207
  %210 = vrot.lane.b32.xlu0 %v208, 32
  %v211 = vpop.permute.xlu0 %210
  %v213 = vsel %vm146, %v211, 0
  %215 = vmatpush.bf16.msra.mxu0 0
  %216 = vmatpush.bf16.msra.mxu0 0
  %217 = vmatpush.bf16.msra.mxu0 0
  %218 = vmatpush.bf16.msra.mxu0 0
  %219 = vmatpush.bf16.msra.mxu0 0
  %220 = vmatpush.bf16.msra.mxu0 0
  %221 = vmatpush.bf16.msra.mxu0 %v143
  %222 = vmatpush.bf16.msra.mxu0 %v142
  %223 = vmatmul.bf16.gmra.mxu0 %v213
  %v224 = vpop.f32.mrf.mxu0
  %v225 = vadd.f32 0.0, %v224
  %v226 = vpop.f32.mrf.mxu0
  %227 = vdwg.mxu0
  %v228 = vadd.f32 %v104, %v225
  %v229 = vxor.u32 %v228, 2147483648
  %v230 = vmul.f32 %v229, 1.442695
  %v231 = vpow.pop %v230
  %v232 = vadd.f32 %v231, 1.0
  %v233 = vrcp.pop %v232
  %v234 = vmul.f32 %v232, %v233
  %v235 = vsub.f32 1.0, %v234
  %v236 = vmul.f32 %v233, %v235
  %v237 = vadd.f32 %v233, %v236
  %vm238 = vweird.f32 %v232
  %vm239 = vweird.f32 %v233
  %vm240 = vmor %vm238, %vm239
  %v241 = vsel %vm240, %v233, %v237
  %v242 = vand.u32 2147483647, %v232
  %vm243 = vcmp.eq.f32.partialorder %v242, 8.507059e+37
  %v244 = vand.u32 %v232, 2147483648
  %v245 = vor.u32 1.1754944e-38, %v244
  %v246 = vsel %vm243, %v245, %v241
  %v247 = vmul.f32 1.0, %v246
  %v248 = vtanh.pop %v228
  %v249 = vmul.f32 %v247, %v206
  %251 = vrot.lane.b32.xlu0 %v248, 64
  %v252 = vpop.permute.xlu0 %251
  %v254 = vmul.f32 %v247, %v252
  %256 = vrot.lane.b32.xlu0 %v254, 32
  %v257 = vpop.permute.xlu0 %256
  %v259 = vadd.f32 %v249, %v257
  %v260 = vtanh.pop %v259
  %262 = vrot.lane.b32.xlu0 %v260, 64
  %v263 = vpop.permute.xlu0 %262
  %v265 = vmul.f32 %v247, %v263
  %v266 = vsel %vm35, 1, 0
  %267 = vset.pattern.permute.xlu0 0
  %268 = vperm.xlu0 %267, %v266
  %v269 = vpop.permute.xlu0 %268
  %vm270 = vcmp.eq.s32.totalorder %v269, 1
  %v271 = vsel %vm270, %v259, %v206
  %v272 = vsel %vm270, %v265, %v207
  %v273 = vsel %vm270, %v265, 0.0
  %275 = vrot.lane.b32.xlu0 %v207, 32
  %v276 = vpop.permute.xlu0 %275
  %v278 = vsel %vm146, %v276, 0.0
  %v279 = vpack.c.bf16 %v278, %v278
  %v281 = vperm.slane %v133, 0
  %v291 = vunpack.c.l.b16 %v125
  %v292 = vunpack.c.l.b16 %v126
  %v293 = vunpack.c.l.b16 %v127
  %v294 = vunpack.c.l.b16 %v128
  %v295 = vunpack.c.l.b16 %v129
  %v296 = vunpack.c.l.b16 %v130
  %v297 = vunpack.c.l.b16 %v131
  %v298 = vunpack.c.l.b16 %v132
  %v299 = vpack.c.b16 %v292, %v291
  %v300 = vpack.c.b16 %v294, %v293
  %v301 = vpack.c.b16 %v296, %v295
  %v302 = vpack.c.b16 %v298, %v297
  %vm307 = vcmask 523264
  %v309 = vsel %vm307, %v279, 0
  %311 = vmatpush.bf16.msra.mxu0 0
  %312 = vmatpush.bf16.msra.mxu0 0
  %313 = vmatpush.bf16.msra.mxu0 0
  %314 = vmatpush.bf16.msra.mxu0 0
  %315 = vmatpush.bf16.msra.mxu0 %v302
  %316 = vmatpush.bf16.msra.mxu0 %v301
  %317 = vmatpush.bf16.msra.mxu0 %v300
  %318 = vmatpush.bf16.msra.mxu0 %v299
  %319 = vmatmul.bf16.gmra.mxu0 %v309
  %v320 = vpop.f32.mrf.mxu0
  %v321 = vadd.f32 %v281, %v320
  %v322 = vpop.f32.mrf.mxu0
  %323 = vdwg.mxu0
  %v324 = vxor.u32 %v321, 2147483648
  %v325 = vmul.f32 %v324, 1.442695
  %v326 = vpow.pop %v325
  %v327 = vadd.f32 %v326, 1.0
  %v328 = vrcp.pop %v327
  %v329 = vmul.f32 %v327, %v328
  %v330 = vsub.f32 1.0, %v329
  %v331 = vmul.f32 %v328, %v330
  %v332 = vadd.f32 %v328, %v331
  %vm333 = vweird.f32 %v327
  %vm334 = vweird.f32 %v328
  %vm335 = vmor %vm333, %vm334
  %v336 = vsel %vm335, %v328, %v332
  %v337 = vand.u32 2147483647, %v327
  %vm338 = vcmp.eq.f32.partialorder %v337, 8.507059e+37
  %v339 = vand.u32 %v327, 2147483648
  %v340 = vor.u32 1.1754944e-38, %v339
  %v341 = vsel %vm338, %v340, %v336
  %v342 = vmul.f32 1.0, %v341
  %v343 = vtanh.pop %v321
  %v344 = vmul.f32 %v342, 0.0
  %346 = vrot.lane.b32.xlu0 %v343, 64
  %v347 = vpop.permute.xlu0 %346
  %v349 = vmul.f32 %v342, %v347
  %351 = vrot.lane.b32.xlu0 %v349, 32
  %v352 = vpop.permute.xlu0 %351
  %v354 = vadd.f32 %v344, %v352
  %v355 = vtanh.pop %v354
  %357 = vrot.lane.b32.xlu0 %v355, 64
  %v358 = vpop.permute.xlu0 %357
  %v360 = vmul.f32 %v342, %v358
  %v361 = vsel %vm205, %v354, 0.0
  %v362 = vsel %vm205, %v360, 0.0
  %v363 = vpack.c.bf16 %v272, %v272
  %365 = vrot.lane.b32.xlu0 %v363, 32
  %v366 = vpop.permute.xlu0 %365
  %v368 = vsel %vm146, %v366, 0
  %370 = vmatpush.bf16.msra.mxu0 0
  %371 = vmatpush.bf16.msra.mxu0 0
  %372 = vmatpush.bf16.msra.mxu0 0
  %373 = vmatpush.bf16.msra.mxu0 0
  %374 = vmatpush.bf16.msra.mxu0 0
  %375 = vmatpush.bf16.msra.mxu0 0
  %376 = vmatpush.bf16.msra.mxu0 %v143
  %377 = vmatpush.bf16.msra.mxu0 %v142
  %378 = vmatmul.bf16.gmra.mxu0 %v368
  %v379 = vpop.f32.mrf.mxu0
  %v380 = vadd.f32 0.0, %v379
  %v381 = vpop.f32.mrf.mxu0
  %382 = vdwg.mxu0
  %v383 = vadd.f32 %v107, %v380
  %v384 = vxor.u32 %v383, 2147483648
  %v385 = vmul.f32 %v384, 1.442695
  %v386 = vpow.pop %v385
  %v387 = vadd.f32 %v386, 1.0
  %v388 = vrcp.pop %v387
  %v389 = vmul.f32 %v387, %v388
  %v390 = vsub.f32 1.0, %v389
  %v391 = vmul.f32 %v388, %v390
  %v392 = vadd.f32 %v388, %v391
  %vm393 = vweird.f32 %v387
  %vm394 = vweird.f32 %v388
  %vm395 = vmor %vm393, %vm394
  %v396 = vsel %vm395, %v388, %v392
  %v397 = vand.u32 2147483647, %v387
  %vm398 = vcmp.eq.f32.partialorder %v397, 8.507059e+37
  %v399 = vand.u32 %v387, 2147483648
  %v400 = vor.u32 1.1754944e-38, %v399
  %v401 = vsel %vm398, %v400, %v396
  %v402 = vmul.f32 1.0, %v401
  %v403 = vtanh.pop %v383
  %v404 = vmul.f32 %v402, %v271
  %406 = vrot.lane.b32.xlu0 %v403, 64
  %v407 = vpop.permute.xlu0 %406
  %v409 = vmul.f32 %v402, %v407
  %411 = vrot.lane.b32.xlu0 %v409, 32
  %v412 = vpop.permute.xlu0 %411
  %v414 = vadd.f32 %v404, %v412
  %v415 = vtanh.pop %v414
  %417 = vrot.lane.b32.xlu0 %v415, 64
  %v418 = vpop.permute.xlu0 %417
  %v420 = vmul.f32 %v402, %v418
  %v421 = vsel %vm36, 1, 0
  %422 = vset.pattern.permute.xlu0 0
  %423 = vperm.xlu0 %422, %v421
  %v424 = vpop.permute.xlu0 %423
  %vm425 = vcmp.eq.s32.totalorder %v424, 1
  %v426 = vsel %vm425, %v414, %v271
  %v427 = vsel %vm425, %v420, %v272
  %v428 = vsel %vm425, %v420, 0.0
  %430 = vrot.lane.b32.xlu0 %v273, 32
  %v431 = vpop.permute.xlu0 %430
  %434 = vrot.lane.b32.xlu0 %v362, 64
  %v435 = vpop.permute.xlu0 %434
  %v437 = vsel %vm146, %v431, %v435
  %v438 = vpack.c.bf16 %v437, %v437
  %v440 = vsel %vm307, %v438, 0
  %442 = vmatpush.bf16.msra.mxu0 0
  %443 = vmatpush.bf16.msra.mxu0 0
  %444 = vmatpush.bf16.msra.mxu0 0
  %445 = vmatpush.bf16.msra.mxu0 0
  %446 = vmatpush.bf16.msra.mxu0 %v302
  %447 = vmatpush.bf16.msra.mxu0 %v301
  %448 = vmatpush.bf16.msra.mxu0 %v300
  %449 = vmatpush.bf16.msra.mxu0 %v299
  %450 = vmatmul.bf16.gmra.mxu0 %v440
  %v451 = vpop.f32.mrf.mxu0
  %v452 = vadd.f32 %v281, %v451
  %v453 = vpop.f32.mrf.mxu0
  %454 = vdwg.mxu0
  %v455 = vxor.u32 %v452, 2147483648
  %v456 = vmul.f32 %v455, 1.442695
  %v457 = vpow.pop %v456
  %v458 = vadd.f32 %v457, 1.0
  %v459 = vrcp.pop %v458
  %v460 = vmul.f32 %v458, %v459
  %v461 = vsub.f32 1.0, %v460
  %v462 = vmul.f32 %v459, %v461
  %v463 = vadd.f32 %v459, %v462
  %vm464 = vweird.f32 %v458
  %vm465 = vweird.f32 %v459
  %vm466 = vmor %vm464, %vm465
  %v467 = vsel %vm466, %v459, %v463
  %v468 = vand.u32 2147483647, %v458
  %vm469 = vcmp.eq.f32.partialorder %v468, 8.507059e+37
  %v470 = vand.u32 %v458, 2147483648
  %v471 = vor.u32 1.1754944e-38, %v470
  %v472 = vsel %vm469, %v471, %v467
  %v473 = vmul.f32 1.0, %v472
  %v474 = vtanh.pop %v452
  %v475 = vmul.f32 %v473, %v361
  %477 = vrot.lane.b32.xlu0 %v474, 64
  %v478 = vpop.permute.xlu0 %477
  %v480 = vmul.f32 %v473, %v478
  %482 = vrot.lane.b32.xlu0 %v480, 32
  %v483 = vpop.permute.xlu0 %482
  %v485 = vadd.f32 %v475, %v483
  %v486 = vtanh.pop %v485
  %488 = vrot.lane.b32.xlu0 %v486, 64
  %v489 = vpop.permute.xlu0 %488
  %v491 = vmul.f32 %v473, %v489
  %v492 = vsel %vm270, %v485, %v361
  %v493 = vsel %vm270, %v491, %v362
  %v494 = vsel %vm270, %v491, 0.0
  %v495 = vpack.c.bf16 %v427, %v427
  %497 = vrot.lane.b32.xlu0 %v495, 32
  %v498 = vpop.permute.xlu0 %497
  %v500 = vsel %vm146, %v498, 0
  %502 = vmatpush.bf16.msra.mxu0 0
  %503 = vmatpush.bf16.msra.mxu0 0
  %504 = vmatpush.bf16.msra.mxu0 0
  %505 = vmatpush.bf16.msra.mxu0 0
  %506 = vmatpush.bf16.msra.mxu0 0
  %507 = vmatpush.bf16.msra.mxu0 0
  %508 = vmatpush.bf16.msra.mxu0 %v143
  %509 = vmatpush.bf16.msra.mxu0 %v142
  %510 = vmatmul.bf16.gmra.mxu0 %v500
  %v511 = vpop.f32.mrf.mxu0
  %v512 = vadd.f32 0.0, %v511
  %v513 = vpop.f32.mrf.mxu0
  %514 = vdwg.mxu0
  %v515 = vadd.f32 %v109, %v512
  %v516 = vxor.u32 %v515, 2147483648
  %v517 = vmul.f32 %v516, 1.442695
  %v518 = vpow.pop %v517
  %v519 = vadd.f32 %v518, 1.0
  %v520 = vrcp.pop %v519
  %v521 = vmul.f32 %v519, %v520
  %v522 = vsub.f32 1.0, %v521
  %v523 = vmul.f32 %v520, %v522
  %v524 = vadd.f32 %v520, %v523
  %vm525 = vweird.f32 %v519
  %vm526 = vweird.f32 %v520
  %vm527 = vmor %vm525, %vm526
  %v528 = vsel %vm527, %v520, %v524
  %v529 = vand.u32 2147483647, %v519
  %vm530 = vcmp.eq.f32.partialorder %v529, 8.507059e+37
  %v531 = vand.u32 %v519, 2147483648
  %v532 = vor.u32 1.1754944e-38, %v531
  %v533 = vsel %vm530, %v532, %v528
  %v534 = vmul.f32 1.0, %v533
  %v535 = vtanh.pop %v515
  %v536 = vmul.f32 %v534, %v426
  %538 = vrot.lane.b32.xlu0 %v535, 64
  %v539 = vpop.permute.xlu0 %538
  %v541 = vmul.f32 %v534, %v539
  %543 = vrot.lane.b32.xlu0 %v541, 32
  %v544 = vpop.permute.xlu0 %543
  %v546 = vadd.f32 %v536, %v544
  %v547 = vtanh.pop %v546
  %549 = vrot.lane.b32.xlu0 %v547, 64
  %v550 = vpop.permute.xlu0 %549
  %v552 = vmul.f32 %v534, %v550
  %v553 = vsel %vm37, 1, 0
  %554 = vset.pattern.permute.xlu0 0
  %555 = vperm.xlu0 %554, %v553
  %v556 = vpop.permute.xlu0 %555
  %vm557 = vcmp.eq.s32.totalorder %v556, 1
  %v558 = vsel %vm557, %v546, %v426
  %v559 = vsel %vm557, %v552, %v427
  %v560 = vsel %vm557, %v552, 0.0
  %562 = vrot.lane.b32.xlu0 %v428, 32
  %v563 = vpop.permute.xlu0 %562
  %566 = vrot.lane.b32.xlu0 %v493, 64
  %v567 = vpop.permute.xlu0 %566
  %v569 = vsel %vm146, %v563, %v567
  %v570 = vpack.c.bf16 %v569, %v569
  %v572 = vsel %vm307, %v570, 0
  %574 = vmatpush.bf16.msra.mxu0 0
  %575 = vmatpush.bf16.msra.mxu0 0
  %576 = vmatpush.bf16.msra.mxu0 0
  %577 = vmatpush.bf16.msra.mxu0 0
  %578 = vmatpush.bf16.msra.mxu0 %v302
  %579 = vmatpush.bf16.msra.mxu0 %v301
  %580 = vmatpush.bf16.msra.mxu0 %v300
  %581 = vmatpush.bf16.msra.mxu0 %v299
  %582 = vmatmul.bf16.gmra.mxu0 %v572
  %v583 = vpop.f32.mrf.mxu0
  %v584 = vadd.f32 %v281, %v583
  %v585 = vpop.f32.mrf.mxu0
  %586 = vdwg.mxu0
  %v587 = vxor.u32 %v584, 2147483648
  %v588 = vmul.f32 %v587, 1.442695
  %v589 = vpow.pop %v588
  %v590 = vadd.f32 %v589, 1.0
  %v591 = vrcp.pop %v590
  %v592 = vmul.f32 %v590, %v591
  %v593 = vsub.f32 1.0, %v592
  %v594 = vmul.f32 %v591, %v593
  %v595 = vadd.f32 %v591, %v594
  %vm596 = vweird.f32 %v590
  %vm597 = vweird.f32 %v591
  %vm598 = vmor %vm596, %vm597
  %v599 = vsel %vm598, %v591, %v595
  %v600 = vand.u32 2147483647, %v590
  %vm601 = vcmp.eq.f32.partialorder %v600, 8.507059e+37
  %v602 = vand.u32 %v590, 2147483648
  %v603 = vor.u32 1.1754944e-38, %v602
  %v604 = vsel %vm601, %v603, %v599
  %v605 = vmul.f32 1.0, %v604
  %v606 = vtanh.pop %v584
  %v607 = vmul.f32 %v605, %v492
  %609 = vrot.lane.b32.xlu0 %v606, 64
  %v610 = vpop.permute.xlu0 %609
  %v612 = vmul.f32 %v605, %v610
  %614 = vrot.lane.b32.xlu0 %v612, 32
  %v615 = vpop.permute.xlu0 %614
  %v617 = vadd.f32 %v607, %v615
  %v618 = vtanh.pop %v617
  %620 = vrot.lane.b32.xlu0 %v618, 64
  %v621 = vpop.permute.xlu0 %620
  %v623 = vmul.f32 %v605, %v621
  %v624 = vsel %vm425, %v617, %v492
  %v625 = vsel %vm425, %v623, %v493
  %v626 = vsel %vm425, %v623, 0.0
  %v627 = vpack.c.bf16 %v559, %v559
  %629 = vrot.lane.b32.xlu0 %v627, 32
  %v630 = vpop.permute.xlu0 %629
  %v632 = vsel %vm146, %v630, 0
  %634 = vmatpush.bf16.msra.mxu0 0
  %635 = vmatpush.bf16.msra.mxu0 0
  %636 = vmatpush.bf16.msra.mxu0 0
  %637 = vmatpush.bf16.msra.mxu0 0
  %638 = vmatpush.bf16.msra.mxu0 0
  %639 = vmatpush.bf16.msra.mxu0 0
  %640 = vmatpush.bf16.msra.mxu0 %v143
  %641 = vmatpush.bf16.msra.mxu0 %v142
  %642 = vmatmul.bf16.gmra.mxu0 %v632
  %v643 = vpop.f32.mrf.mxu0
  %v644 = vadd.f32 0.0, %v643
  %v645 = vpop.f32.mrf.mxu0
  %646 = vdwg.mxu0
  %v647 = vadd.f32 %v112, %v644
  %v648 = vxor.u32 %v647, 2147483648
  %v649 = vmul.f32 %v648, 1.442695
  %v650 = vpow.pop %v649
  %v651 = vadd.f32 %v650, 1.0
  %v652 = vrcp.pop %v651
  %v653 = vmul.f32 %v651, %v652
  %v654 = vsub.f32 1.0, %v653
  %v655 = vmul.f32 %v652, %v654
  %v656 = vadd.f32 %v652, %v655
  %vm657 = vweird.f32 %v651
  %vm658 = vweird.f32 %v652
  %vm659 = vmor %vm657, %vm658
  %v660 = vsel %vm659, %v652, %v656
  %v661 = vand.u32 2147483647, %v651
  %vm662 = vcmp.eq.f32.partialorder %v661, 8.507059e+37
  %v663 = vand.u32 %v651, 2147483648
  %v664 = vor.u32 1.1754944e-38, %v663
  %v665 = vsel %vm662, %v664, %v660
  %v666 = vmul.f32 1.0, %v665
  %v667 = vtanh.pop %v647
  %v668 = vmul.f32 %v666, %v558
  %670 = vrot.lane.b32.xlu0 %v667, 64
  %v671 = vpop.permute.xlu0 %670
  %v673 = vmul.f32 %v666, %v671
  %675 = vrot.lane.b32.xlu0 %v673, 32
  %v676 = vpop.permute.xlu0 %675
  %v678 = vadd.f32 %v668, %v676
  %v679 = vtanh.pop %v678
  %681 = vrot.lane.b32.xlu0 %v679, 64
  %v682 = vpop.permute.xlu0 %681
  %v684 = vmul.f32 %v666, %v682
  %v685 = vsel %vm38, 1, 0
  %686 = vset.pattern.permute.xlu0 0
  %687 = vperm.xlu0 %686, %v685
  %v688 = vpop.permute.xlu0 %687
  %vm689 = vcmp.eq.s32.totalorder %v688, 1
  %v690 = vsel %vm689, %v678, %v558
  %v691 = vsel %vm689, %v684, %v559
  %v692 = vsel %vm689, %v684, 0.0
  %694 = vrot.lane.b32.xlu0 %v560, 32
  %v695 = vpop.permute.xlu0 %694
  %698 = vrot.lane.b32.xlu0 %v625, 64
  %v699 = vpop.permute.xlu0 %698
  %v701 = vsel %vm146, %v695, %v699
  %v702 = vpack.c.bf16 %v701, %v701
  %v704 = vsel %vm307, %v702, 0
  %706 = vmatpush.bf16.msra.mxu0 0
  %707 = vmatpush.bf16.msra.mxu0 0
  %708 = vmatpush.bf16.msra.mxu0 0
  %709 = vmatpush.bf16.msra.mxu0 0
  %710 = vmatpush.bf16.msra.mxu0 %v302
  %711 = vmatpush.bf16.msra.mxu0 %v301
  %712 = vmatpush.bf16.msra.mxu0 %v300
  %713 = vmatpush.bf16.msra.mxu0 %v299
  %714 = vmatmul.bf16.gmra.mxu0 %v704
  %v715 = vpop.f32.mrf.mxu0
  %v716 = vadd.f32 %v281, %v715
  %v717 = vpop.f32.mrf.mxu0
  %718 = vdwg.mxu0
  %v719 = vxor.u32 %v716, 2147483648
  %v720 = vmul.f32 %v719, 1.442695
  %v721 = vpow.pop %v720
  %v722 = vadd.f32 %v721, 1.0
  %v723 = vrcp.pop %v722
  %v724 = vmul.f32 %v722, %v723
  %v725 = vsub.f32 1.0, %v724
  %v726 = vmul.f32 %v723, %v725
  %v727 = vadd.f32 %v723, %v726
  %vm728 = vweird.f32 %v722
  %vm729 = vweird.f32 %v723
  %vm730 = vmor %vm728, %vm729
  %v731 = vsel %vm730, %v723, %v727
  %v732 = vand.u32 2147483647, %v722
  %vm733 = vcmp.eq.f32.partialorder %v732, 8.507059e+37
  %v734 = vand.u32 %v722, 2147483648
  %v735 = vor.u32 1.1754944e-38, %v734
  %v736 = vsel %vm733, %v735, %v731
  %v737 = vmul.f32 1.0, %v736
  %v738 = vtanh.pop %v716
  %v739 = vmul.f32 %v737, %v624
  %741 = vrot.lane.b32.xlu0 %v738, 64
  %v742 = vpop.permute.xlu0 %741
  %v744 = vmul.f32 %v737, %v742
  %746 = vrot.lane.b32.xlu0 %v744, 32
  %v747 = vpop.permute.xlu0 %746
  %v749 = vadd.f32 %v739, %v747
  %v750 = vtanh.pop %v749
  %752 = vrot.lane.b32.xlu0 %v750, 64
  %v753 = vpop.permute.xlu0 %752
  %v755 = vmul.f32 %v737, %v753
  %v756 = vsel %vm557, %v749, %v624
  %v757 = vsel %vm557, %v755, %v625
  %v758 = vsel %vm557, %v755, 0.0
  %v759 = vpack.c.bf16 %v691, %v691
  %761 = vrot.lane.b32.xlu0 %v759, 32
  %v762 = vpop.permute.xlu0 %761
  %v764 = vsel %vm146, %v762, 0
  %766 = vmatpush.bf16.msra.mxu0 0
  %767 = vmatpush.bf16.msra.mxu0 0
  %768 = vmatpush.bf16.msra.mxu0 0
  %769 = vmatpush.bf16.msra.mxu0 0
  %770 = vmatpush.bf16.msra.mxu0 0
  %771 = vmatpush.bf16.msra.mxu0 0
  %772 = vmatpush.bf16.msra.mxu0 %v143
  %773 = vmatpush.bf16.msra.mxu0 %v142
  %774 = vmatmul.bf16.gmra.mxu0 %v764
  %v775 = vpop.f32.mrf.mxu0
  %v776 = vadd.f32 0.0, %v775
  %v777 = vpop.f32.mrf.mxu0
  %778 = vdwg.mxu0
  %v779 = vadd.f32 %v114, %v776
  %v780 = vxor.u32 %v779, 2147483648
  %v781 = vmul.f32 %v780, 1.442695
  %v782 = vpow.pop %v781
  %v783 = vadd.f32 %v782, 1.0
  %v784 = vrcp.pop %v783
  %v785 = vmul.f32 %v783, %v784
  %v786 = vsub.f32 1.0, %v785
  %v787 = vmul.f32 %v784, %v786
  %v788 = vadd.f32 %v784, %v787
  %vm789 = vweird.f32 %v783
  %vm790 = vweird.f32 %v784
  %vm791 = vmor %vm789, %vm790
  %v792 = vsel %vm791, %v784, %v788
  %v793 = vand.u32 2147483647, %v783
  %vm794 = vcmp.eq.f32.partialorder %v793, 8.507059e+37
  %v795 = vand.u32 %v783, 2147483648
  %v796 = vor.u32 1.1754944e-38, %v795
  %v797 = vsel %vm794, %v796, %v792
  %v798 = vmul.f32 1.0, %v797
  %v799 = vtanh.pop %v779
  %v800 = vmul.f32 %v798, %v690
  %802 = vrot.lane.b32.xlu0 %v799, 64
  %v803 = vpop.permute.xlu0 %802
  %v805 = vmul.f32 %v798, %v803
  %807 = vrot.lane.b32.xlu0 %v805, 32
  %v808 = vpop.permute.xlu0 %807
  %v810 = vadd.f32 %v800, %v808
  %v811 = vtanh.pop %v810
  %813 = vrot.lane.b32.xlu0 %v811, 64
  %v814 = vpop.permute.xlu0 %813
  %v816 = vmul.f32 %v798, %v814
  %v817 = vsel %vm39, 1, 0
  %818 = vset.pattern.permute.xlu0 0
  %819 = vperm.xlu0 %818, %v817
  %v820 = vpop.permute.xlu0 %819
  %vm821 = vcmp.eq.s32.totalorder %v820, 1
  %v822 = vsel %vm821, %v810, %v690
  %v823 = vsel %vm821, %v816, %v691
  %v824 = vsel %vm821, %v816, 0.0
  %826 = vrot.lane.b32.xlu0 %v692, 32
  %v827 = vpop.permute.xlu0 %826
  %830 = vrot.lane.b32.xlu0 %v757, 64
  %v831 = vpop.permute.xlu0 %830
  %v833 = vsel %vm146, %v827, %v831
  %v834 = vpack.c.bf16 %v833, %v833
  %v836 = vsel %vm307, %v834, 0
  %838 = vmatpush.bf16.msra.mxu0 0
  %839 = vmatpush.bf16.msra.mxu0 0
  %840 = vmatpush.bf16.msra.mxu0 0
  %841 = vmatpush.bf16.msra.mxu0 0
  %842 = vmatpush.bf16.msra.mxu0 %v302
  %843 = vmatpush.bf16.msra.mxu0 %v301
  %844 = vmatpush.bf16.msra.mxu0 %v300
  %845 = vmatpush.bf16.msra.mxu0 %v299
  %846 = vmatmul.bf16.gmra.mxu0 %v836
  %v847 = vpop.f32.mrf.mxu0
  %v848 = vadd.f32 %v281, %v847
  %v849 = vpop.f32.mrf.mxu0
  %850 = vdwg.mxu0
  %v851 = vxor.u32 %v848, 2147483648
  %v852 = vmul.f32 %v851, 1.442695
  %v853 = vpow.pop %v852
  %v854 = vadd.f32 %v853, 1.0
  %v855 = vrcp.pop %v854
  %v856 = vmul.f32 %v854, %v855
  %v857 = vsub.f32 1.0, %v856
  %v858 = vmul.f32 %v855, %v857
  %v859 = vadd.f32 %v855, %v858
  %vm860 = vweird.f32 %v854
  %vm861 = vweird.f32 %v855
  %vm862 = vmor %vm860, %vm861
  %v863 = vsel %vm862, %v855, %v859
  %v864 = vand.u32 2147483647, %v854
  %vm865 = vcmp.eq.f32.partialorder %v864, 8.507059e+37
  %v866 = vand.u32 %v854, 2147483648
  %v867 = vor.u32 1.1754944e-38, %v866
  %v868 = vsel %vm865, %v867, %v863
  %v869 = vmul.f32 1.0, %v868
  %v870 = vtanh.pop %v848
  %v871 = vmul.f32 %v869, %v756
  %873 = vrot.lane.b32.xlu0 %v870, 64
  %v874 = vpop.permute.xlu0 %873
  %v876 = vmul.f32 %v869, %v874
  %878 = vrot.lane.b32.xlu0 %v876, 32
  %v879 = vpop.permute.xlu0 %878
  %v881 = vadd.f32 %v871, %v879
  %v882 = vtanh.pop %v881
  %884 = vrot.lane.b32.xlu0 %v882, 64
  %v885 = vpop.permute.xlu0 %884
  %v887 = vmul.f32 %v869, %v885
  %v888 = vsel %vm689, %v881, %v756
  %v889 = vsel %vm689, %v887, %v757
  %v890 = vsel %vm689, %v887, 0.0
  %v891 = vpack.c.bf16 %v823, %v823
  %893 = vrot.lane.b32.xlu0 %v891, 32
  %v894 = vpop.permute.xlu0 %893
  %v896 = vsel %vm146, %v894, 0
  %898 = vmatpush.bf16.msra.mxu0 0
  %899 = vmatpush.bf16.msra.mxu0 0
  %900 = vmatpush.bf16.msra.mxu0 0
  %901 = vmatpush.bf16.msra.mxu0 0
  %902 = vmatpush.bf16.msra.mxu0 0
  %903 = vmatpush.bf16.msra.mxu0 0
  %904 = vmatpush.bf16.msra.mxu0 %v143
  %905 = vmatpush.bf16.msra.mxu0 %v142
  %906 = vmatmul.bf16.gmra.mxu0 %v896
  %v907 = vpop.f32.mrf.mxu0
  %v908 = vadd.f32 0.0, %v907
  %v909 = vpop.f32.mrf.mxu0
  %910 = vdwg.mxu0
  %v911 = vadd.f32 %v117, %v908
  %v912 = vxor.u32 %v911, 2147483648
  %v913 = vmul.f32 %v912, 1.442695
  %v914 = vpow.pop %v913
  %v915 = vadd.f32 %v914, 1.0
  %v916 = vrcp.pop %v915
  %v917 = vmul.f32 %v915, %v916
  %v918 = vsub.f32 1.0, %v917
  %v919 = vmul.f32 %v916, %v918
  %v920 = vadd.f32 %v916, %v919
  %vm921 = vweird.f32 %v915
  %vm922 = vweird.f32 %v916
  %vm923 = vmor %vm921, %vm922
  %v924 = vsel %vm923, %v916, %v920
  %v925 = vand.u32 2147483647, %v915
  %vm926 = vcmp.eq.f32.partialorder %v925, 8.507059e+37
  %v927 = vand.u32 %v915, 2147483648
  %v928 = vor.u32 1.1754944e-38, %v927
  %v929 = vsel %vm926, %v928, %v924
  %v930 = vmul.f32 1.0, %v929
  %v931 = vtanh.pop %v911
  %v932 = vmul.f32 %v930, %v822
  %934 = vrot.lane.b32.xlu0 %v931, 64
  %v935 = vpop.permute.xlu0 %934
  %v937 = vmul.f32 %v930, %v935
  %939 = vrot.lane.b32.xlu0 %v937, 32
  %v940 = vpop.permute.xlu0 %939
  %v942 = vadd.f32 %v932, %v940
  %v943 = vtanh.pop %v942
  %945 = vrot.lane.b32.xlu0 %v943, 64
  %v946 = vpop.permute.xlu0 %945
  %v948 = vmul.f32 %v930, %v946
  %v949 = vsel %vm40, 1, 0
  %950 = vset.pattern.permute.xlu0 0
  %951 = vperm.xlu0 %950, %v949
  %v952 = vpop.permute.xlu0 %951
  %vm953 = vcmp.eq.s32.totalorder %v952, 1
  %v954 = vsel %vm953, %v942, %v822
  %v955 = vsel %vm953, %v948, %v823
  %v956 = vsel %vm953, %v948, 0.0
  %958 = vrot.lane.b32.xlu0 %v824, 32
  %v959 = vpop.permute.xlu0 %958
  %962 = vrot.lane.b32.xlu0 %v889, 64
  %v963 = vpop.permute.xlu0 %962
  %v965 = vsel %vm146, %v959, %v963
  %v966 = vpack.c.bf16 %v965, %v965
  %v968 = vsel %vm307, %v966, 0
  %970 = vmatpush.bf16.msra.mxu0 0
  %971 = vmatpush.bf16.msra.mxu0 0
  %972 = vmatpush.bf16.msra.mxu0 0
  %973 = vmatpush.bf16.msra.mxu0 0
  %974 = vmatpush.bf16.msra.mxu0 %v302
  %975 = vmatpush.bf16.msra.mxu0 %v301
  %976 = vmatpush.bf16.msra.mxu0 %v300
  %977 = vmatpush.bf16.msra.mxu0 %v299
  %978 = vmatmul.bf16.gmra.mxu0 %v968
  %v979 = vpop.f32.mrf.mxu0
  %v980 = vadd.f32 %v281, %v979
  %v981 = vpop.f32.mrf.mxu0
  %982 = vdwg.mxu0
  %v983 = vxor.u32 %v980, 2147483648
  %v984 = vmul.f32 %v983, 1.442695
  %v985 = vpow.pop %v984
  %v986 = vadd.f32 %v985, 1.0
  %v987 = vrcp.pop %v986
  %v988 = vmul.f32 %v986, %v987
  %v989 = vsub.f32 1.0, %v988
  %v990 = vmul.f32 %v987, %v989
  %v991 = vadd.f32 %v987, %v990
  %vm992 = vweird.f32 %v986
  %vm993 = vweird.f32 %v987
  %vm994 = vmor %vm992, %vm993
  %v995 = vsel %vm994, %v987, %v991
  %v996 = vand.u32 2147483647, %v986
  %vm997 = vcmp.eq.f32.partialorder %v996, 8.507059e+37
  %v998 = vand.u32 %v986, 2147483648
  %v999 = vor.u32 1.1754944e-38, %v998
  %v1000 = vsel %vm997, %v999, %v995
  %v1001 = vmul.f32 1.0, %v1000
  %v1002 = vtanh.pop %v980
  %v1003 = vmul.f32 %v1001, %v888
  %1005 = vrot.lane.b32.xlu0 %v1002, 64
  %v1006 = vpop.permute.xlu0 %1005
  %v1008 = vmul.f32 %v1001, %v1006
  %1010 = vrot.lane.b32.xlu0 %v1008, 32
  %v1011 = vpop.permute.xlu0 %1010
  %v1013 = vadd.f32 %v1003, %v1011
  %v1014 = vtanh.pop %v1013
  %1016 = vrot.lane.b32.xlu0 %v1014, 64
  %v1017 = vpop.permute.xlu0 %1016
  %v1019 = vmul.f32 %v1001, %v1017
  %v1020 = vsel %vm821, %v1013, %v888
  %v1021 = vsel %vm821, %v1019, %v889
  %v1022 = vsel %vm821, %v1019, 0.0
  %v1023 = vpack.c.bf16 %v955, %v955
  %1025 = vrot.lane.b32.xlu0 %v1023, 32
  %v1026 = vpop.permute.xlu0 %1025
  %v1028 = vsel %vm146, %v1026, 0
  %1030 = vmatpush.bf16.msra.mxu0 0
  %1031 = vmatpush.bf16.msra.mxu0 0
  %1032 = vmatpush.bf16.msra.mxu0 0
  %1033 = vmatpush.bf16.msra.mxu0 0
  %1034 = vmatpush.bf16.msra.mxu0 0
  %1035 = vmatpush.bf16.msra.mxu0 0
  %1036 = vmatpush.bf16.msra.mxu0 %v143
  %1037 = vmatpush.bf16.msra.mxu0 %v142
  %1038 = vmatmul.bf16.gmra.mxu0 %v1028
  %v1039 = vpop.f32.mrf.mxu0
  %v1040 = vadd.f32 0.0, %v1039
  %v1041 = vpop.f32.mrf.mxu0
  %1042 = vdwg.mxu0
  %v1043 = vadd.f32 %v119, %v1040
  %v1044 = vxor.u32 %v1043, 2147483648
  %v1045 = vmul.f32 %v1044, 1.442695
  %v1046 = vpow.pop %v1045
  %v1047 = vadd.f32 %v1046, 1.0
  %v1048 = vrcp.pop %v1047
  %v1049 = vmul.f32 %v1047, %v1048
  %v1050 = vsub.f32 1.0, %v1049
  %v1051 = vmul.f32 %v1048, %v1050
  %v1052 = vadd.f32 %v1048, %v1051
  %vm1053 = vweird.f32 %v1047
  %vm1054 = vweird.f32 %v1048
  %vm1055 = vmor %vm1053, %vm1054
  %v1056 = vsel %vm1055, %v1048, %v1052
  %v1057 = vand.u32 2147483647, %v1047
  %vm1058 = vcmp.eq.f32.partialorder %v1057, 8.507059e+37
  %v1059 = vand.u32 %v1047, 2147483648
  %v1060 = vor.u32 1.1754944e-38, %v1059
  %v1061 = vsel %vm1058, %v1060, %v1056
  %v1062 = vmul.f32 1.0, %v1061
  %v1063 = vtanh.pop %v1043
  %v1064 = vmul.f32 %v1062, %v954
  %1066 = vrot.lane.b32.xlu0 %v1063, 64
  %v1067 = vpop.permute.xlu0 %1066
  %v1069 = vmul.f32 %v1062, %v1067
  %1071 = vrot.lane.b32.xlu0 %v1069, 32
  %v1072 = vpop.permute.xlu0 %1071
  %v1074 = vadd.f32 %v1064, %v1072
  %v1075 = vtanh.pop %v1074
  %1077 = vrot.lane.b32.xlu0 %v1075, 64
  %v1078 = vpop.permute.xlu0 %1077
  %v1080 = vmul.f32 %v1062, %v1078
  %v1081 = vsel %vm41, 1, 0
  %1082 = vset.pattern.permute.xlu0 0
  %1083 = vperm.xlu0 %1082, %v1081
  %v1084 = vpop.permute.xlu0 %1083
  %vm1085 = vcmp.eq.s32.totalorder %v1084, 1
  %v1086 = vsel %vm1085, %v1080, 0.0
  %1088 = vrot.lane.b32.xlu0 %v956, 32
  %v1089 = vpop.permute.xlu0 %1088
  %1092 = vrot.lane.b32.xlu0 %v1021, 64
  %v1093 = vpop.permute.xlu0 %1092
  %v1095 = vsel %vm146, %v1089, %v1093
  %v1096 = vpack.c.bf16 %v1095, %v1095
  %v1098 = vsel %vm307, %v1096, 0
  %1100 = vmatpush.bf16.msra.mxu0 0
  %1101 = vmatpush.bf16.msra.mxu0 0
  %1102 = vmatpush.bf16.msra.mxu0 0
  %1103 = vmatpush.bf16.msra.mxu0 0
  %1104 = vmatpush.bf16.msra.mxu0 %v302
  %1105 = vmatpush.bf16.msra.mxu0 %v301
  %1106 = vmatpush.bf16.msra.mxu0 %v300
  %1107 = vmatpush.bf16.msra.mxu0 %v299
  %1108 = vmatmul.bf16.gmra.mxu0 %v1098
  %v1109 = vpop.f32.mrf.mxu0
  %v1110 = vadd.f32 %v281, %v1109
  %v1111 = vpop.f32.mrf.mxu0
  %1112 = vdwg.mxu0
  %v1113 = vxor.u32 %v1110, 2147483648
  %v1114 = vmul.f32 %v1113, 1.442695
  %v1115 = vpow.pop %v1114
  %v1116 = vadd.f32 %v1115, 1.0
  %v1117 = vrcp.pop %v1116
  %v1118 = vmul.f32 %v1116, %v1117
  %v1119 = vsub.f32 1.0, %v1118
  %v1120 = vmul.f32 %v1117, %v1119
  %v1121 = vadd.f32 %v1117, %v1120
  %vm1122 = vweird.f32 %v1116
  %vm1123 = vweird.f32 %v1117
  %vm1124 = vmor %vm1122, %vm1123
  %v1125 = vsel %vm1124, %v1117, %v1121
  %v1126 = vand.u32 2147483647, %v1116
  %vm1127 = vcmp.eq.f32.partialorder %v1126, 8.507059e+37
  %v1128 = vand.u32 %v1116, 2147483648
  %v1129 = vor.u32 1.1754944e-38, %v1128
  %v1130 = vsel %vm1127, %v1129, %v1125
  %v1131 = vmul.f32 1.0, %v1130
  %v1132 = vtanh.pop %v1110
  %v1133 = vmul.f32 %v1131, %v1020
  %1135 = vrot.lane.b32.xlu0 %v1132, 64
  %v1136 = vpop.permute.xlu0 %1135
  %v1138 = vmul.f32 %v1131, %v1136
  %1140 = vrot.lane.b32.xlu0 %v1138, 32
  %v1141 = vpop.permute.xlu0 %1140
  %v1143 = vadd.f32 %v1133, %v1141
  %v1144 = vtanh.pop %v1143
  %1146 = vrot.lane.b32.xlu0 %v1144, 64
  %v1147 = vpop.permute.xlu0 %1146
  %v1149 = vmul.f32 %v1131, %v1147
  %v1150 = vsel %vm953, %v1143, %v1020
  %v1151 = vsel %vm953, %v1149, %v1021
  %v1152 = vsel %vm953, %v1149, 0.0
  %1154 = vrot.lane.b32.xlu0 %v1086, 32
  %v1155 = vpop.permute.xlu0 %1154
  %1158 = vrot.lane.b32.xlu0 %v1151, 64
  %v1159 = vpop.permute.xlu0 %1158
  %v1161 = vsel %vm146, %v1155, %v1159
  %v1162 = vpack.c.bf16 %v1161, %v1161
  %v1164 = vsel %vm307, %v1162, 0
  %1166 = vmatpush.bf16.msra.mxu0 0
  %1167 = vmatpush.bf16.msra.mxu0 0
  %1168 = vmatpush.bf16.msra.mxu0 0
  %1169 = vmatpush.bf16.msra.mxu0 0
  %1170 = vmatpush.bf16.msra.mxu0 %v302
  %1171 = vmatpush.bf16.msra.mxu0 %v301
  %1172 = vmatpush.bf16.msra.mxu0 %v300
  %1173 = vmatpush.bf16.msra.mxu0 %v299
  %1174 = vmatmul.bf16.gmra.mxu0 %v1164
  %v1175 = vpop.f32.mrf.mxu0
  %v1176 = vadd.f32 %v281, %v1175
  %v1177 = vpop.f32.mrf.mxu0
  %1178 = vdwg.mxu0
  %v1179 = vxor.u32 %v1176, 2147483648
  %v1180 = vmul.f32 %v1179, 1.442695
  %v1181 = vpow.pop %v1180
  %v1182 = vadd.f32 %v1181, 1.0
  %v1183 = vrcp.pop %v1182
  %v1184 = vmul.f32 %v1182, %v1183
  %v1185 = vsub.f32 1.0, %v1184
  %v1186 = vmul.f32 %v1183, %v1185
  %v1187 = vadd.f32 %v1183, %v1186
  %vm1188 = vweird.f32 %v1182
  %vm1189 = vweird.f32 %v1183
  %vm1190 = vmor %vm1188, %vm1189
  %v1191 = vsel %vm1190, %v1183, %v1187
  %v1192 = vand.u32 2147483647, %v1182
  %vm1193 = vcmp.eq.f32.partialorder %v1192, 8.507059e+37
  %v1194 = vand.u32 %v1182, 2147483648
  %v1195 = vor.u32 1.1754944e-38, %v1194
  %v1196 = vsel %vm1193, %v1195, %v1191
  %v1197 = vmul.f32 1.0, %v1196
  %v1198 = vtanh.pop %v1176
  %v1199 = vmul.f32 %v1197, %v1150
  %1201 = vrot.lane.b32.xlu0 %v1198, 64
  %v1202 = vpop.permute.xlu0 %1201
  %v1204 = vmul.f32 %v1197, %v1202
  %1206 = vrot.lane.b32.xlu0 %v1204, 32
  %v1207 = vpop.permute.xlu0 %1206
  %v1209 = vadd.f32 %v1199, %v1207
  %v1210 = vtanh.pop %v1209
  %1212 = vrot.lane.b32.xlu0 %v1210, 64
  %v1213 = vpop.permute.xlu0 %1212
  %v1215 = vmul.f32 %v1197, %v1213
  %v1216 = vsel %vm1085, %v1215, 0.0
  %v1217 = vpack.c.bf16 %v494, %v362
  %v1218 = vpack.c.bf16 %v758, %v626
  %v1219 = vpack.c.bf16 %v1022, %v890
  %v1220 = vpack.c.bf16 %v1216, %v1152
  %v1221 = vld [vmem:[%s7] sm:$0xf]
  %v1222 = vld [vmem:[%s7 + $0x4] sm:$0xf]
  %v1223 = vld [vmem:[%s7 + $0x8] sm:$0xf]
  %v1224 = vld [vmem:[%s7 + $0xc] sm:$0xf]
  %v1225 = vld [vmem:[%s8] sm:$0x1]
  %v1227 = vperm.slane %v1225, 0
  %1233 = vrot.lane.b32.xlu0 %v1217, 32
  %v1234 = vpop.permute.xlu0 %1233
  %1235 = vrot.lane.b32.xlu0 %v1218, 32
  %v1236 = vpop.permute.xlu0 %1235
  %1237 = vrot.lane.b32.xlu0 %v1219, 32
  %v1238 = vpop.permute.xlu0 %1237
  %1239 = vrot.lane.b32.xlu0 %v1220, 32
  %v1240 = vpop.permute.xlu0 %1239
  %v1245 = vunpack.c.l.b16 %v1221
  %v1246 = vunpack.c.l.b16 %v1222
  %v1247 = vunpack.c.l.b16 %v1223
  %v1248 = vunpack.c.l.b16 %v1224
  %v1249 = vpack.c.b16 %v1246, %v1245
  %v1250 = vpack.c.b16 %v1248, %v1247
  %v1254 = vsel %vm146, %v1234, 0
  %v1257 = vsel %vm146, %v1236, 0
  %v1260 = vsel %vm146, %v1238, 0
  %v1263 = vsel %vm146, %v1240, 0
  %1265 = vmatpush.bf16.msra.mxu0 0
  %1266 = vmatpush.bf16.msra.mxu0 0
  %1267 = vmatpush.bf16.msra.mxu0 0
  %1268 = vmatpush.bf16.msra.mxu0 0
  %1269 = vmatpush.bf16.msra.mxu0 0
  %1270 = vmatpush.bf16.msra.mxu0 0
  %1271 = vmatpush.bf16.msra.mxu0 %v1250
  %1272 = vmatpush.bf16.msra.mxu0 %v1249
  %1273 = vmatmul.bf16.gmra.mxu0 %v1254
  %v1274 = vpop.f32.mrf.mxu0
  %v1275 = vadd.f32 %v1227, %v1274
  %v1276 = vpop.f32.mrf.mxu0
  %v1277 = vadd.f32 %v1227, %v1276
  %1278 = vmatmul.bf16.gmra.mxu0 %v1257
  %v1279 = vpop.f32.mrf.mxu0
  %v1280 = vadd.f32 %v1227, %v1279
  %v1281 = vpop.f32.mrf.mxu0
  %v1282 = vadd.f32 %v1227, %v1281
  %1283 = vmatmul.bf16.gmra.mxu0 %v1260
  %v1284 = vpop.f32.mrf.mxu0
  %v1285 = vadd.f32 %v1227, %v1284
  %v1286 = vpop.f32.mrf.mxu0
  %v1287 = vadd.f32 %v1227, %v1286
  %1288 = vmatmul.bf16.gmra.mxu0 %v1263
  %v1289 = vpop.f32.mrf.mxu0
  %v1290 = vadd.f32 %v1227, %v1289
  %v1291 = vpop.f32.mrf.mxu0
  %v1292 = vadd.f32 %v1227, %v1291
  %1293 = vdwg.mxu0
  %1294 = vst [vmem:[%s9] sm:$0xff] %v1275
  %1295 = vst [vmem:[%s9 + $0x8] sm:$0xff] %v1277
  %1296 = vst [vmem:[%s9 + $0x10] sm:$0xff] %v1280
  %1297 = vst [vmem:[%s9 + $0x18] sm:$0xff] %v1282
  %1298 = vst [vmem:[%s9 + $0x20] sm:$0xff] %v1285
  %1299 = vst [vmem:[%s9 + $0x28] sm:$0xff] %v1287
  %1300 = vst [vmem:[%s9 + $0x30] sm:$0xff] %v1290
  %1301 = vst [vmem:[%s9 + $0x38] sm:$0xff] %v1292
  // Predicated region
  $region38: #{mma_rnn_forward.1} parent=0 // pred_check
    _
  $region39: #{mma_rnn_forward.1} parent=0 // pred_check_branch
    %1303 = sbr.rel (0) target = $region41
  $region40: #{mma_rnn_forward.1} parent=0 // pred_region
    _
  $region41: #{mma_rnn_forward.1} parent=0 // pred_fallthru
    _
  // Predicated region
  $region42: #{mma_rnn_forward.1} parent=0 // pred_check
    _
  $region43: #{mma_rnn_forward.1} parent=0 // pred_check_branch
    %1305 = sbr.rel (0) target = $region45
  $region44: #{mma_rnn_forward.1} parent=0 // pred_region
    _
  $region45: #{mma_rnn_forward.1} parent=0 // pred_fallthru
    _

</llo_original>
